<compile_context>
chip_gen: v5e
topology: v5e:2x2
jax: 0.10.0
libtpu: 0.0.40
codegen_flags: <defaults>
</compile_context>

<pallas_src>
import functools

import numpy as np
import jax
import jax.numpy as jnp
from jax import lax
from jax.experimental import pallas as pl
from jax.experimental.pallas import tpu as pltpu


def _round_up(x, m):
    return (x + m - 1) // m * m


def _sigmoid(x):
    # sigmoid(x) == 0.5 * (tanh(0.5 * x) + 1): single EUP op instead of exp + divide.
    return 0.5 * jnp.tanh(0.5 * x) + 0.5


# -----------------------------------------------------------------------------
# Pallas kernel: recurrent part of one LSTM layer, time-blocked.
# -----------------------------------------------------------------------------
def _lstm_rec_kernel(pre_ref, whh_ref, h0_ref, c0_ref,
                     y_ref, hn_ref, cn_ref, h_sc, c_sc,
                     *, t_blk, hp, t_total, needs_mask):
    blk = pl.program_id(0)

    @pl.when(blk == 0)
    def _():
        h_sc[...] = h0_ref[...]
        c_sc[...] = c0_ref[...]

    whh = whh_ref[...]                         # (Hp, 4*Hp), VMEM-resident weights

    def step(tt, carry):
        h, c = carry
        # Only the recurrent matmul is on the sequential critical path.
        gates = pre_ref[tt] + jnp.dot(h, whh, preferred_element_type=jnp.float32)
        # Gate slabs are 128-lane aligned (Hp is a multiple of 128).
        i_g = _sigmoid(gates[:, 0 * hp:1 * hp])
        f_g = _sigmoid(gates[:, 1 * hp:2 * hp])
        g_g = jnp.tanh(gates[:, 2 * hp:3 * hp])
        o_g = _sigmoid(gates[:, 3 * hp:4 * hp])
        c_new = f_g * c + i_g * g_g
        h_new = o_g * jnp.tanh(c_new)
        y_ref[tt] = h_new                      # full (Bp, Hp) lane-dense store
        if needs_mask:                         # static: only when T was padded
            valid = (blk * t_blk + tt) < t_total
            h_new = jnp.where(valid, h_new, h)
            c_new = jnp.where(valid, c_new, c)
        return h_new, c_new

    h, c = lax.fori_loop(0, t_blk, step, (h_sc[...], c_sc[...]), unroll=True)
    h_sc[...] = h
    c_sc[...] = c

    @pl.when(blk == pl.num_programs(0) - 1)
    def _():
        hn_ref[...] = h
        cn_ref[...] = c


def lstm_layer_pallas(x, w_ih, w_hh, b_ih, b_hh, h0, c0, *, t_blk=16):
    """One LSTM layer.
    x:(T,B,I), w_ih:(4H,I), w_hh:(4H,H), b_ih/b_hh:(4H,), h0/c0:(B,H).
    Returns y:(T,B,H), h_n:(B,H), c_n:(B,H)."""
    T, B, _ = x.shape
    H = w_hh.shape[1]

    t_blk = max(1, min(t_blk, T))
    Tp = _round_up(T, t_blk)
    Bp = _round_up(B, 8)          # sublane alignment
    Hp = _round_up(H, 128)        # lane alignment per gate slab

    # (1) Hoisted input projection: one large MXU-efficient matmul, outside the
    #     strictly sequential recurrence.
    pre = jnp.einsum("tbi,gi->tbg", x, w_ih,
                     precision=lax.Precision.HIGHEST) + (b_ih + b_hh)   # (T,B,4H)

    # (2) Re-layout into 4 tile-aligned gate slabs of width Hp; zero-pad
    #     T -> Tp, B -> Bp, H -> Hp.  Zero padding keeps padded lanes/rows
    #     exactly zero through the recurrence (zero W_hh rows/cols).
    pre = pre.reshape(T, B, 4, H)
    pre = jnp.pad(pre, ((0, Tp - T), (0, Bp - B), (0, 0), (0, Hp - H)))
    pre = pre.reshape(Tp, Bp, 4 * Hp)

    whh_t = w_hh.T.reshape(H, 4, H)                               # (H, 4, H)
    whh_t = jnp.pad(whh_t, ((0, Hp - H), (0, 0), (0, Hp - H)))
    whh_t = whh_t.reshape(Hp, 4 * Hp)                             # (Hp, 4*Hp)

    h0p = jnp.pad(h0, ((0, Bp - B), (0, Hp - H)))
    c0p = jnp.pad(c0, ((0, Bp - B), (0, Hp - H)))

    n_blk = Tp // t_blk

    # Rough VMEM budget (f32, double-buffered time blocks + resident weights);
    # raise the scoped limit on v5e/v6e when this gets big, cap at 64 MiB (v7x).
    est = 4 * (2 * t_blk * Bp * 4 * Hp + 2 * t_blk * Bp * Hp
               + Hp * 4 * Hp + 6 * Bp * Hp)
    vmem_limit = int(min(max(2 * est, 32 * 1024 * 1024), 64 * 1024 * 1024))

    kernel = functools.partial(_lstm_rec_kernel, t_blk=t_blk, hp=Hp,
                               t_total=T, needs_mask=(Tp != T))

    grid_spec = pltpu.PrefetchScalarGridSpec(
        num_scalar_prefetch=0,
        grid=(n_blk,),
        in_specs=[
            pl.BlockSpec((t_blk, Bp, 4 * Hp), lambda b: (b, 0, 0)),   # pre-gates
            pl.BlockSpec((Hp, 4 * Hp), lambda b: (0, 0)),             # W_hh^T (resident)
            pl.BlockSpec((Bp, Hp), lambda b: (0, 0)),                 # h0
            pl.BlockSpec((Bp, Hp), lambda b: (0, 0)),                 # c0
        ],
        out_specs=[
            pl.BlockSpec((t_blk, Bp, Hp), lambda b: (b, 0, 0)),       # y time block
            pl.BlockSpec((Bp, Hp), lambda b: (0, 0)),                 # h_n
            pl.BlockSpec((Bp, Hp), lambda b: (0, 0)),                 # c_n
        ],
        scratch_shapes=[
            pltpu.VMEM((Bp, Hp), jnp.float32),                        # h carry
            pltpu.VMEM((Bp, Hp), jnp.float32),                        # c carry
        ],
    )

    y, hn, cn = pl.pallas_call(
        kernel,
        out_shape=(
            jax.ShapeDtypeStruct((Tp, Bp, Hp), jnp.float32),
            jax.ShapeDtypeStruct((Bp, Hp), jnp.float32),
            jax.ShapeDtypeStruct((Bp, Hp), jnp.float32),
        ),
        grid_spec=grid_spec,
        compiler_params=pltpu.CompilerParams(
            dimension_semantics=("arbitrary",),    # time recurrence: sequential
            vmem_limit_bytes=vmem_limit),
    )(pre, whh_t, h0p, c0p)

    return y[:T, :B, :H], hn[:B, :H], cn[:B, :H]


# -----------------------------------------------------------------------------
# Parameter construction (mirrors nn.LSTM shapes / init intent)
# -----------------------------------------------------------------------------
def _orthogonal(key, shape, gain):
    rows, cols = shape
    n, m = max(rows, cols), min(rows, cols)
    a = jax.random.normal(key, (n, m), jnp.float32)
    q, r = jnp.linalg.qr(a)
    q = q * jnp.sign(jnp.diag(r))[None, :]
    if rows < cols:
        q = q.T
    return gain * q


def make_lstm_params(key, input_size, hidden_size, num_layers):
    params = []
    bound = 1.0 / np.sqrt(hidden_size)
    for layer in range(num_layers):
        in_sz = input_size if layer == 0 else hidden_size
        key, k1, k2, k3, k4 = jax.random.split(key, 5)
        if layer == 0:
            # nn.init.orthogonal_(..., gain=sqrt(2)) on weight_ih_l0 / weight_hh_l0
            w_ih = _orthogonal(k1, (4 * hidden_size, in_sz), np.sqrt(2.0))
            w_hh = _orthogonal(k2, (4 * hidden_size, hidden_size), np.sqrt(2.0))
        else:
            w_ih = jax.random.uniform(k1, (4 * hidden_size, in_sz),
                                      jnp.float32, -bound, bound)
            w_hh = jax.random.uniform(k2, (4 * hidden_size, hidden_size),
                                      jnp.float32, -bound, bound)
        b_ih = jax.random.uniform(k3, (4 * hidden_size,), jnp.float32, -bound, bound)
        b_hh = jax.random.uniform(k4, (4 * hidden_size,), jnp.float32, -bound, bound)
        params.append((w_ih, w_hh, b_ih, b_hh))
    return params


# -----------------------------------------------------------------------------
# dLSTM forward (multi-layer), Pallas path and pure-JAX reference
# -----------------------------------------------------------------------------
def dlstm_forward_pallas(x, params, h0, c0):
    """x:(T,B,I), h0/c0:(L,B,H). Returns y:(T,B,H), (h_n, c_n):(L,B,H)."""
    layer_in = x
    h_list, c_list = [], []
    for l, (w_ih, w_hh, b_ih, b_hh) in enumerate(params):
        y, hn, cn = lstm_layer_pallas(layer_in, w_ih, w_hh, b_ih, b_hh,
                                      h0[l], c0[l])
        h_list.append(hn)
        c_list.append(cn)
        layer_in = y
    return layer_in, (jnp.stack(h_list), jnp.stack(c_list))


def dlstm_forward_ref(x, params, h0, c0):
    """Pure-JAX reference (lax.scan), PyTorch nn.LSTM gate ordering i,f,g,o."""
    layer_in = x
    h_list, c_list = [], []
    for l, (w_ih, w_hh, b_ih, b_hh) in enumerate(params):
        H = w_hh.shape[1]

        def step(carry, x_t):
            h, c = carry
            gates = (jnp.dot(x_t, w_ih.T, precision=lax.Precision.HIGHEST)
                     + jnp.dot(h, w_hh.T, precision=lax.Precision.HIGHEST)
                     + b_ih + b_hh)
            i = jax.nn.sigmoid(gates[:, 0 * H:1 * H])
            f = jax.nn.sigmoid(gates[:, 1 * H:2 * H])
            g = jnp.tanh(gates[:, 2 * H:3 * H])
            o = jax.nn.sigmoid(gates[:, 3 * H:4 * H])
            c_new = f * c + i * g
            h_new = o * jnp.tanh(c_new)
            return (h_new, c_new), h_new

        (hn, cn), ys = lax.scan(step, (h0[l], c0[l]), layer_in)
        h_list.append(hn)
        c_list.append(cn)
        layer_in = ys
    return layer_in, (jnp.stack(h_list), jnp.stack(c_list))


# -----------------------------------------------------------------------------
if __name__ == "__main__":
    seq_len, batch, input_size, hidden_size, num_layers = 8, 2, 16, 32, 2

    key = jax.random.PRNGKey(0)
    k_x, k_h, k_c, k_p = jax.random.split(key, 4)

    x = jax.random.normal(k_x, (seq_len, batch, input_size), jnp.float32)
    h0 = jax.random.normal(k_h, (num_layers, batch, hidden_size), jnp.float32)
    c0 = jax.random.normal(k_c, (num_layers, batch, hidden_size), jnp.float32)
    params = make_lstm_params(k_p, input_size, hidden_size, num_layers)

    fwd = jax.jit(dlstm_forward_pallas)
    y, (h_n, c_n) = fwd(x, params, h0, c0)
    jax.block_until_ready((y, h_n, c_n))

    y_ref, (h_ref, c_ref) = dlstm_forward_ref(x, params, h0, c0)
    np.testing.assert_allclose(np.asarray(y), np.asarray(y_ref), rtol=1e-4, atol=1e-4)
    np.testing.assert_allclose(np.asarray(h_n), np.asarray(h_ref), rtol=1e-4, atol=1e-4)
    np.testing.assert_allclose(np.asarray(c_n), np.asarray(c_ref), rtol=1e-4, atol=1e-4)

    assert y.shape == (seq_len, batch, hidden_size)
    assert h_n.shape == (num_layers, batch, hidden_size)
    assert c_n.shape == (num_layers, batch, hidden_size)

    print("KERNEL_OK")
</pallas_src>

<mosaic_0001>
module attributes {stable_mosaic.version = 11 : i64} {
  func.func @_lstm_rec_kernel(%arg0: i32, %arg1: memref<8x8x512xf32, #tpu.memory_space<vmem>>, %arg2: memref<128x512xf32, #tpu.memory_space<vmem>>, %arg3: memref<8x128xf32, #tpu.memory_space<vmem>>, %arg4: memref<8x128xf32, #tpu.memory_space<vmem>>, %arg5: memref<8x8x128xf32, #tpu.memory_space<vmem>>, %arg6: memref<8x128xf32, #tpu.memory_space<vmem>>, %arg7: memref<8x128xf32, #tpu.memory_space<vmem>>, %arg8: memref<8x128xf32, #tpu.memory_space<vmem>>, %arg9: memref<8x128xf32, #tpu.memory_space<vmem>>) attributes {dimension_semantics = [#tpu.dimension_semantics<arbitrary>], iteration_bounds = array<i64: 1>, scalar_prefetch = 0 : i64, scratch_operands = 2 : i64, tpu.core_type = #tpu.core_type<tc>, window_params = [{transform_indices = @transform_0, window_bounds = array<i64: 8, 8, 512>}, {pipeline_mode = #tpu.pipeline_mode<synchronous>, transform_indices = @transform_1, window_bounds = array<i64: 128, 512>}, {pipeline_mode = #tpu.pipeline_mode<synchronous>, transform_indices = @transform_2, window_bounds = array<i64: 8, 128>}, {pipeline_mode = #tpu.pipeline_mode<synchronous>, transform_indices = @transform_3, window_bounds = array<i64: 8, 128>}, {transform_indices = @transform_4, window_bounds = array<i64: 8, 8, 128>}, {pipeline_mode = #tpu.pipeline_mode<synchronous>, transform_indices = @transform_5, window_bounds = array<i64: 8, 128>}, {pipeline_mode = #tpu.pipeline_mode<synchronous>, transform_indices = @transform_6, window_bounds = array<i64: 8, 128>}]} {
    %c0_i32 = arith.constant 0 : i32
    %0 = arith.cmpi eq, %arg0, %c0_i32 : i32
    %1 = arith.extui %0 : i1 to i32
    %c0_i32_0 = arith.constant 0 : i32
    %2 = arith.cmpi ne, %1, %c0_i32_0 : i32
    scf.if %2 {
      %c0_124 = arith.constant 0 : index
      %c0_125 = arith.constant 0 : index
      %331 = vector.load %arg3[%c0_124, %c0_125] : memref<8x128xf32, #tpu.memory_space<vmem>>, vector<8x128xf32>
      %c0_126 = arith.constant 0 : index
      %c0_127 = arith.constant 0 : index
      %332 = vector.load %arg8[%c0_126, %c0_127] : memref<8x128xf32, #tpu.memory_space<vmem>>, vector<8x128xf32>
      tpu.vector_store %arg8[%c0_126, %c0_127], %331 {strides = array<i32>} : memref<8x128xf32, #tpu.memory_space<vmem>>, vector<8x128xf32>,
      %c0_128 = arith.constant 0 : index
      %c0_129 = arith.constant 0 : index
      %333 = vector.load %arg4[%c0_128, %c0_129] : memref<8x128xf32, #tpu.memory_space<vmem>>, vector<8x128xf32>
      %c0_130 = arith.constant 0 : index
      %c0_131 = arith.constant 0 : index
      %334 = vector.load %arg9[%c0_130, %c0_131] : memref<8x128xf32, #tpu.memory_space<vmem>>, vector<8x128xf32>
      tpu.vector_store %arg9[%c0_130, %c0_131], %333 {strides = array<i32>} : memref<8x128xf32, #tpu.memory_space<vmem>>, vector<8x128xf32>,
    } else {
    }
    %c0 = arith.constant 0 : index
    %c0_1 = arith.constant 0 : index
    %3 = vector.load %arg2[%c0, %c0_1] : memref<128x512xf32, #tpu.memory_space<vmem>>, vector<128x512xf32>
    %c0_2 = arith.constant 0 : index
    %c0_3 = arith.constant 0 : index
    %4 = vector.load %arg8[%c0_2, %c0_3] : memref<8x128xf32, #tpu.memory_space<vmem>>, vector<8x128xf32>
    %c0_4 = arith.constant 0 : index
    %c0_5 = arith.constant 0 : index
    %5 = vector.load %arg9[%c0_4, %c0_5] : memref<8x128xf32, #tpu.memory_space<vmem>>, vector<8x128xf32>
    %c0_i32_6 = arith.constant 0 : i32
    %6 = arith.index_cast %c0_i32_6 : i32 to index
    %c0_7 = arith.constant 0 : index
    %c0_8 = arith.constant 0 : index
    %7 = vector.load %arg1[%6, %c0_7, %c0_8] : memref<8x8x512xf32, #tpu.memory_space<vmem>>, vector<1x8x512xf32>
    %8 = vector.shape_cast %7 : vector<1x8x512xf32> to vector<8x512xf32>
    %cst = arith.constant dense<0.000000e+00> : vector<8x512xf32>
    %9 = tpu.matmul %4, %3, %cst {dimension_numbers = #tpu.dot_dimension_numbers<[1], [0], [0], [1], [0, 0, 1, 1], [], []>} : vector<8x128xf32>, vector<128x512xf32>, vector<8x512xf32> -> vector<8x512xf32>
    %10 = arith.addf %8, %9 : vector<8x512xf32>
    %11 = vector.extract_strided_slice %10 {offsets = [0, 0], sizes = [8, 128], strides = [1, 1]} : vector<8x512xf32> to vector<8x128xf32>
    %cst_9 = arith.constant 5.000000e-01 : f32
    %12 = vector.broadcast %cst_9 : f32 to vector<8x128xf32>
    %13 = arith.mulf %12, %11 : vector<8x128xf32>
    %14 = math.tanh %13 : vector<8x128xf32>
    %cst_10 = arith.constant 5.000000e-01 : f32
    %15 = vector.broadcast %cst_10 : f32 to vector<8x128xf32>
    %16 = arith.mulf %15, %14 : vector<8x128xf32>
    %cst_11 = arith.constant 5.000000e-01 : f32
    %17 = vector.broadcast %cst_11 : f32 to vector<8x128xf32>
    %18 = arith.addf %16, %17 : vector<8x128xf32>
    %19 = vector.extract_strided_slice %10 {offsets = [0, 128], sizes = [8, 128], strides = [1, 1]} : vector<8x512xf32> to vector<8x128xf32>
    %cst_12 = arith.constant 5.000000e-01 : f32
    %20 = vector.broadcast %cst_12 : f32 to vector<8x128xf32>
    %21 = arith.mulf %20, %19 : vector<8x128xf32>
    %22 = math.tanh %21 : vector<8x128xf32>
    %cst_13 = arith.constant 5.000000e-01 : f32
    %23 = vector.broadcast %cst_13 : f32 to vector<8x128xf32>
    %24 = arith.mulf %23, %22 : vector<8x128xf32>
    %cst_14 = arith.constant 5.000000e-01 : f32
    %25 = vector.broadcast %cst_14 : f32 to vector<8x128xf32>
    %26 = arith.addf %24, %25 : vector<8x128xf32>
    %27 = vector.extract_strided_slice %10 {offsets = [0, 256], sizes = [8, 128], strides = [1, 1]} : vector<8x512xf32> to vector<8x128xf32>
    %28 = math.tanh %27 : vector<8x128xf32>
    %29 = vector.extract_strided_slice %10 {offsets = [0, 384], sizes = [8, 128], strides = [1, 1]} : vector<8x512xf32> to vector<8x128xf32>
    %cst_15 = arith.constant 5.000000e-01 : f32
    %30 = vector.broadcast %cst_15 : f32 to vector<8x128xf32>
    %31 = arith.mulf %30, %29 : vector<8x128xf32>
    %32 = math.tanh %31 : vector<8x128xf32>
    %cst_16 = arith.constant 5.000000e-01 : f32
    %33 = vector.broadcast %cst_16 : f32 to vector<8x128xf32>
    %34 = arith.mulf %33, %32 : vector<8x128xf32>
    %cst_17 = arith.constant 5.000000e-01 : f32
    %35 = vector.broadcast %cst_17 : f32 to vector<8x128xf32>
    %36 = arith.addf %34, %35 : vector<8x128xf32>
    %37 = arith.mulf %26, %5 : vector<8x128xf32>
    %38 = arith.mulf %18, %28 : vector<8x128xf32>
    %39 = arith.addf %37, %38 : vector<8x128xf32>
    %40 = math.tanh %39 : vector<8x128xf32>
    %41 = arith.mulf %36, %40 : vector<8x128xf32>
    %42 = arith.index_cast %c0_i32_6 : i32 to index
    %c0_18 = arith.constant 0 : index
    %c0_19 = arith.constant 0 : index
    %43 = vector.load %arg5[%42, %c0_18, %c0_19] : memref<8x8x128xf32, #tpu.memory_space<vmem>>, vector<1x8x128xf32>
    %44 = vector.shape_cast %43 : vector<1x8x128xf32> to vector<8x128xf32>
    %45 = vector.shape_cast %41 : vector<8x128xf32> to vector<1x8x128xf32>
    tpu.vector_store %arg5[%42, %c0_18, %c0_19], %45 {strides = array<i32>} : memref<8x8x128xf32, #tpu.memory_space<vmem>>, vector<1x8x128xf32>,
    %c1_i32 = arith.constant 1 : i32
    %46 = arith.index_cast %c1_i32 : i32 to index
    %c0_20 = arith.constant 0 : index
    %c0_21 = arith.constant 0 : index
    %47 = vector.load %arg1[%46, %c0_20, %c0_21] : memref<8x8x512xf32, #tpu.memory_space<vmem>>, vector<1x8x512xf32>
    %48 = vector.shape_cast %47 : vector<1x8x512xf32> to vector<8x512xf32>
    %cst_22 = arith.constant dense<0.000000e+00> : vector<8x512xf32>
    %49 = tpu.matmul %41, %3, %cst_22 {dimension_numbers = #tpu.dot_dimension_numbers<[1], [0], [0], [1], [0, 0, 1, 1], [], []>} : vector<8x128xf32>, vector<128x512xf32>, vector<8x512xf32> -> vector<8x512xf32>
    %50 = arith.addf %48, %49 : vector<8x512xf32>
    %51 = vector.extract_strided_slice %50 {offsets = [0, 0], sizes = [8, 128], strides = [1, 1]} : vector<8x512xf32> to vector<8x128xf32>
    %cst_23 = arith.constant 5.000000e-01 : f32
    %52 = vector.broadcast %cst_23 : f32 to vector<8x128xf32>
    %53 = arith.mulf %52, %51 : vector<8x128xf32>
    %54 = math.tanh %53 : vector<8x128xf32>
    %cst_24 = arith.constant 5.000000e-01 : f32
    %55 = vector.broadcast %cst_24 : f32 to vector<8x128xf32>
    %56 = arith.mulf %55, %54 : vector<8x128xf32>
    %cst_25 = arith.constant 5.000000e-01 : f32
    %57 = vector.broadcast %cst_25 : f32 to vector<8x128xf32>
    %58 = arith.addf %56, %57 : vector<8x128xf32>
    %59 = vector.extract_strided_slice %50 {offsets = [0, 128], sizes = [8, 128], strides = [1, 1]} : vector<8x512xf32> to vector<8x128xf32>
    %cst_26 = arith.constant 5.000000e-01 : f32
    %60 = vector.broadcast %cst_26 : f32 to vector<8x128xf32>
    %61 = arith.mulf %60, %59 : vector<8x128xf32>
    %62 = math.tanh %61 : vector<8x128xf32>
    %cst_27 = arith.constant 5.000000e-01 : f32
    %63 = vector.broadcast %cst_27 : f32 to vector<8x128xf32>
    %64 = arith.mulf %63, %62 : vector<8x128xf32>
    %cst_28 = arith.constant 5.000000e-01 : f32
    %65 = vector.broadcast %cst_28 : f32 to vector<8x128xf32>
    %66 = arith.addf %64, %65 : vector<8x128xf32>
    %67 = vector.extract_strided_slice %50 {offsets = [0, 256], sizes = [8, 128], strides = [1, 1]} : vector<8x512xf32> to vector<8x128xf32>
    %68 = math.tanh %67 : vector<8x128xf32>
    %69 = vector.extract_strided_slice %50 {offsets = [0, 384], sizes = [8, 128], strides = [1, 1]} : vector<8x512xf32> to vector<8x128xf32>
    %cst_29 = arith.constant 5.000000e-01 : f32
    %70 = vector.broadcast %cst_29 : f32 to vector<8x128xf32>
    %71 = arith.mulf %70, %69 : vector<8x128xf32>
    %72 = math.tanh %71 : vector<8x128xf32>
    %cst_30 = arith.constant 5.000000e-01 : f32
    %73 = vector.broadcast %cst_30 : f32 to vector<8x128xf32>
    %74 = arith.mulf %73, %72 : vector<8x128xf32>
    %cst_31 = arith.constant 5.000000e-01 : f32
    %75 = vector.broadcast %cst_31 : f32 to vector<8x128xf32>
    %76 = arith.addf %74, %75 : vector<8x128xf32>
    %77 = arith.mulf %66, %39 : vector<8x128xf32>
    %78 = arith.mulf %58, %68 : vector<8x128xf32>
    %79 = arith.addf %77, %78 : vector<8x128xf32>
    %80 = math.tanh %79 : vector<8x128xf32>
    %81 = arith.mulf %76, %80 : vector<8x128xf32>
    %82 = arith.index_cast %c1_i32 : i32 to index
    %c0_32 = arith.constant 0 : index
    %c0_33 = arith.constant 0 : index
    %83 = vector.load %arg5[%82, %c0_32, %c0_33] : memref<8x8x128xf32, #tpu.memory_space<vmem>>, vector<1x8x128xf32>
    %84 = vector.shape_cast %83 : vector<1x8x128xf32> to vector<8x128xf32>
    %85 = vector.shape_cast %81 : vector<8x128xf32> to vector<1x8x128xf32>
    tpu.vector_store %arg5[%82, %c0_32, %c0_33], %85 {strides = array<i32>} : memref<8x8x128xf32, #tpu.memory_space<vmem>>, vector<1x8x128xf32>,
    %c2_i32 = arith.constant 2 : i32
    %86 = arith.index_cast %c2_i32 : i32 to index
    %c0_34 = arith.constant 0 : index
    %c0_35 = arith.constant 0 : index
    %87 = vector.load %arg1[%86, %c0_34, %c0_35] : memref<8x8x512xf32, #tpu.memory_space<vmem>>, vector<1x8x512xf32>
    %88 = vector.shape_cast %87 : vector<1x8x512xf32> to vector<8x512xf32>
    %cst_36 = arith.constant dense<0.000000e+00> : vector<8x512xf32>
    %89 = tpu.matmul %81, %3, %cst_36 {dimension_numbers = #tpu.dot_dimension_numbers<[1], [0], [0], [1], [0, 0, 1, 1], [], []>} : vector<8x128xf32>, vector<128x512xf32>, vector<8x512xf32> -> vector<8x512xf32>
    %90 = arith.addf %88, %89 : vector<8x512xf32>
    %91 = vector.extract_strided_slice %90 {offsets = [0, 0], sizes = [8, 128], strides = [1, 1]} : vector<8x512xf32> to vector<8x128xf32>
    %cst_37 = arith.constant 5.000000e-01 : f32
    %92 = vector.broadcast %cst_37 : f32 to vector<8x128xf32>
    %93 = arith.mulf %92, %91 : vector<8x128xf32>
    %94 = math.tanh %93 : vector<8x128xf32>
    %cst_38 = arith.constant 5.000000e-01 : f32
    %95 = vector.broadcast %cst_38 : f32 to vector<8x128xf32>
    %96 = arith.mulf %95, %94 : vector<8x128xf32>
    %cst_39 = arith.constant 5.000000e-01 : f32
    %97 = vector.broadcast %cst_39 : f32 to vector<8x128xf32>
    %98 = arith.addf %96, %97 : vector<8x128xf32>
    %99 = vector.extract_strided_slice %90 {offsets = [0, 128], sizes = [8, 128], strides = [1, 1]} : vector<8x512xf32> to vector<8x128xf32>
    %cst_40 = arith.constant 5.000000e-01 : f32
    %100 = vector.broadcast %cst_40 : f32 to vector<8x128xf32>
    %101 = arith.mulf %100, %99 : vector<8x128xf32>
    %102 = math.tanh %101 : vector<8x128xf32>
    %cst_41 = arith.constant 5.000000e-01 : f32
    %103 = vector.broadcast %cst_41 : f32 to vector<8x128xf32>
    %104 = arith.mulf %103, %102 : vector<8x128xf32>
    %cst_42 = arith.constant 5.000000e-01 : f32
    %105 = vector.broadcast %cst_42 : f32 to vector<8x128xf32>
    %106 = arith.addf %104, %105 : vector<8x128xf32>
    %107 = vector.extract_strided_slice %90 {offsets = [0, 256], sizes = [8, 128], strides = [1, 1]} : vector<8x512xf32> to vector<8x128xf32>
    %108 = math.tanh %107 : vector<8x128xf32>
    %109 = vector.extract_strided_slice %90 {offsets = [0, 384], sizes = [8, 128], strides = [1, 1]} : vector<8x512xf32> to vector<8x128xf32>
    %cst_43 = arith.constant 5.000000e-01 : f32
    %110 = vector.broadcast %cst_43 : f32 to vector<8x128xf32>
    %111 = arith.mulf %110, %109 : vector<8x128xf32>
    %112 = math.tanh %111 : vector<8x128xf32>
    %cst_44 = arith.constant 5.000000e-01 : f32
    %113 = vector.broadcast %cst_44 : f32 to vector<8x128xf32>
    %114 = arith.mulf %113, %112 : vector<8x128xf32>
    %cst_45 = arith.constant 5.000000e-01 : f32
    %115 = vector.broadcast %cst_45 : f32 to vector<8x128xf32>
    %116 = arith.addf %114, %115 : vector<8x128xf32>
    %117 = arith.mulf %106, %79 : vector<8x128xf32>
    %118 = arith.mulf %98, %108 : vector<8x128xf32>
    %119 = arith.addf %117, %118 : vector<8x128xf32>
    %120 = math.tanh %119 : vector<8x128xf32>
    %121 = arith.mulf %116, %120 : vector<8x128xf32>
    %122 = arith.index_cast %c2_i32 : i32 to index
    %c0_46 = arith.constant 0 : index
    %c0_47 = arith.constant 0 : index
    %123 = vector.load %arg5[%122, %c0_46, %c0_47] : memref<8x8x128xf32, #tpu.memory_space<vmem>>, vector<1x8x128xf32>
    %124 = vector.shape_cast %123 : vector<1x8x128xf32> to vector<8x128xf32>
    %125 = vector.shape_cast %121 : vector<8x128xf32> to vector<1x8x128xf32>
    tpu.vector_store %arg5[%122, %c0_46, %c0_47], %125 {strides = array<i32>} : memref<8x8x128xf32, #tpu.memory_space<vmem>>, vector<1x8x128xf32>,
    %c3_i32 = arith.constant 3 : i32
    %126 = arith.index_cast %c3_i32 : i32 to index
    %c0_48 = arith.constant 0 : index
    %c0_49 = arith.constant 0 : index
    %127 = vector.load %arg1[%126, %c0_48, %c0_49] : memref<8x8x512xf32, #tpu.memory_space<vmem>>, vector<1x8x512xf32>
    %128 = vector.shape_cast %127 : vector<1x8x512xf32> to vector<8x512xf32>
    %cst_50 = arith.constant dense<0.000000e+00> : vector<8x512xf32>
    %129 = tpu.matmul %121, %3, %cst_50 {dimension_numbers = #tpu.dot_dimension_numbers<[1], [0], [0], [1], [0, 0, 1, 1], [], []>} : vector<8x128xf32>, vector<128x512xf32>, vector<8x512xf32> -> vector<8x512xf32>
    %130 = arith.addf %128, %129 : vector<8x512xf32>
    %131 = vector.extract_strided_slice %130 {offsets = [0, 0], sizes = [8, 128], strides = [1, 1]} : vector<8x512xf32> to vector<8x128xf32>
    %cst_51 = arith.constant 5.000000e-01 : f32
    %132 = vector.broadcast %cst_51 : f32 to vector<8x128xf32>
    %133 = arith.mulf %132, %131 : vector<8x128xf32>
    %134 = math.tanh %133 : vector<8x128xf32>
    %cst_52 = arith.constant 5.000000e-01 : f32
    %135 = vector.broadcast %cst_52 : f32 to vector<8x128xf32>
    %136 = arith.mulf %135, %134 : vector<8x128xf32>
    %cst_53 = arith.constant 5.000000e-01 : f32
    %137 = vector.broadcast %cst_53 : f32 to vector<8x128xf32>
    %138 = arith.addf %136, %137 : vector<8x128xf32>
    %139 = vector.extract_strided_slice %130 {offsets = [0, 128], sizes = [8, 128], strides = [1, 1]} : vector<8x512xf32> to vector<8x128xf32>
    %cst_54 = arith.constant 5.000000e-01 : f32
    %140 = vector.broadcast %cst_54 : f32 to vector<8x128xf32>
    %141 = arith.mulf %140, %139 : vector<8x128xf32>
    %142 = math.tanh %141 : vector<8x128xf32>
    %cst_55 = arith.constant 5.000000e-01 : f32
    %143 = vector.broadcast %cst_55 : f32 to vector<8x128xf32>
    %144 = arith.mulf %143, %142 : vector<8x128xf32>
    %cst_56 = arith.constant 5.000000e-01 : f32
    %145 = vector.broadcast %cst_56 : f32 to vector<8x128xf32>
    %146 = arith.addf %144, %145 : vector<8x128xf32>
    %147 = vector.extract_strided_slice %130 {offsets = [0, 256], sizes = [8, 128], strides = [1, 1]} : vector<8x512xf32> to vector<8x128xf32>
    %148 = math.tanh %147 : vector<8x128xf32>
    %149 = vector.extract_strided_slice %130 {offsets = [0, 384], sizes = [8, 128], strides = [1, 1]} : vector<8x512xf32> to vector<8x128xf32>
    %cst_57 = arith.constant 5.000000e-01 : f32
    %150 = vector.broadcast %cst_57 : f32 to vector<8x128xf32>
    %151 = arith.mulf %150, %149 : vector<8x128xf32>
    %152 = math.tanh %151 : vector<8x128xf32>
    %cst_58 = arith.constant 5.000000e-01 : f32
    %153 = vector.broadcast %cst_58 : f32 to vector<8x128xf32>
    %154 = arith.mulf %153, %152 : vector<8x128xf32>
    %cst_59 = arith.constant 5.000000e-01 : f32
    %155 = vector.broadcast %cst_59 : f32 to vector<8x128xf32>
    %156 = arith.addf %154, %155 : vector<8x128xf32>
    %157 = arith.mulf %146, %119 : vector<8x128xf32>
    %158 = arith.mulf %138, %148 : vector<8x128xf32>
    %159 = arith.addf %157, %158 : vector<8x128xf32>
    %160 = math.tanh %159 : vector<8x128xf32>
    %161 = arith.mulf %156, %160 : vector<8x128xf32>
    %162 = arith.index_cast %c3_i32 : i32 to index
    %c0_60 = arith.constant 0 : index
    %c0_61 = arith.constant 0 : index
    %163 = vector.load %arg5[%162, %c0_60, %c0_61] : memref<8x8x128xf32, #tpu.memory_space<vmem>>, vector<1x8x128xf32>
    %164 = vector.shape_cast %163 : vector<1x8x128xf32> to vector<8x128xf32>
    %165 = vector.shape_cast %161 : vector<8x128xf32> to vector<1x8x128xf32>
    tpu.vector_store %arg5[%162, %c0_60, %c0_61], %165 {strides = array<i32>} : memref<8x8x128xf32, #tpu.memory_space<vmem>>, vector<1x8x128xf32>,
    %c4_i32 = arith.constant 4 : i32
    %166 = arith.index_cast %c4_i32 : i32 to index
    %c0_62 = arith.constant 0 : index
    %c0_63 = arith.constant 0 : index
    %167 = vector.load %arg1[%166, %c0_62, %c0_63] : memref<8x8x512xf32, #tpu.memory_space<vmem>>, vector<1x8x512xf32>
    %168 = vector.shape_cast %167 : vector<1x8x512xf32> to vector<8x512xf32>
    %cst_64 = arith.constant dense<0.000000e+00> : vector<8x512xf32>
    %169 = tpu.matmul %161, %3, %cst_64 {dimension_numbers = #tpu.dot_dimension_numbers<[1], [0], [0], [1], [0, 0, 1, 1], [], []>} : vector<8x128xf32>, vector<128x512xf32>, vector<8x512xf32> -> vector<8x512xf32>
    %170 = arith.addf %168, %169 : vector<8x512xf32>
    %171 = vector.extract_strided_slice %170 {offsets = [0, 0], sizes = [8, 128], strides = [1, 1]} : vector<8x512xf32> to vector<8x128xf32>
    %cst_65 = arith.constant 5.000000e-01 : f32
    %172 = vector.broadcast %cst_65 : f32 to vector<8x128xf32>
    %173 = arith.mulf %172, %171 : vector<8x128xf32>
    %174 = math.tanh %173 : vector<8x128xf32>
    %cst_66 = arith.constant 5.000000e-01 : f32
    %175 = vector.broadcast %cst_66 : f32 to vector<8x128xf32>
    %176 = arith.mulf %175, %174 : vector<8x128xf32>
    %cst_67 = arith.constant 5.000000e-01 : f32
    %177 = vector.broadcast %cst_67 : f32 to vector<8x128xf32>
    %178 = arith.addf %176, %177 : vector<8x128xf32>
    %179 = vector.extract_strided_slice %170 {offsets = [0, 128], sizes = [8, 128], strides = [1, 1]} : vector<8x512xf32> to vector<8x128xf32>
    %cst_68 = arith.constant 5.000000e-01 : f32
    %180 = vector.broadcast %cst_68 : f32 to vector<8x128xf32>
    %181 = arith.mulf %180, %179 : vector<8x128xf32>
    %182 = math.tanh %181 : vector<8x128xf32>
    %cst_69 = arith.constant 5.000000e-01 : f32
    %183 = vector.broadcast %cst_69 : f32 to vector<8x128xf32>
    %184 = arith.mulf %183, %182 : vector<8x128xf32>
    %cst_70 = arith.constant 5.000000e-01 : f32
    %185 = vector.broadcast %cst_70 : f32 to vector<8x128xf32>
    %186 = arith.addf %184, %185 : vector<8x128xf32>
    %187 = vector.extract_strided_slice %170 {offsets = [0, 256], sizes = [8, 128], strides = [1, 1]} : vector<8x512xf32> to vector<8x128xf32>
    %188 = math.tanh %187 : vector<8x128xf32>
    %189 = vector.extract_strided_slice %170 {offsets = [0, 384], sizes = [8, 128], strides = [1, 1]} : vector<8x512xf32> to vector<8x128xf32>
    %cst_71 = arith.constant 5.000000e-01 : f32
    %190 = vector.broadcast %cst_71 : f32 to vector<8x128xf32>
    %191 = arith.mulf %190, %189 : vector<8x128xf32>
    %192 = math.tanh %191 : vector<8x128xf32>
    %cst_72 = arith.constant 5.000000e-01 : f32
    %193 = vector.broadcast %cst_72 : f32 to vector<8x128xf32>
    %194 = arith.mulf %193, %192 : vector<8x128xf32>
    %cst_73 = arith.constant 5.000000e-01 : f32
    %195 = vector.broadcast %cst_73 : f32 to vector<8x128xf32>
    %196 = arith.addf %194, %195 : vector<8x128xf32>
    %197 = arith.mulf %186, %159 : vector<8x128xf32>
    %198 = arith.mulf %178, %188 : vector<8x128xf32>
    %199 = arith.addf %197, %198 : vector<8x128xf32>
    %200 = math.tanh %199 : vector<8x128xf32>
    %201 = arith.mulf %196, %200 : vector<8x128xf32>
    %202 = arith.index_cast %c4_i32 : i32 to index
    %c0_74 = arith.constant 0 : index
    %c0_75 = arith.constant 0 : index
    %203 = vector.load %arg5[%202, %c0_74, %c0_75] : memref<8x8x128xf32, #tpu.memory_space<vmem>>, vector<1x8x128xf32>
    %204 = vector.shape_cast %203 : vector<1x8x128xf32> to vector<8x128xf32>
    %205 = vector.shape_cast %201 : vector<8x128xf32> to vector<1x8x128xf32>
    tpu.vector_store %arg5[%202, %c0_74, %c0_75], %205 {strides = array<i32>} : memref<8x8x128xf32, #tpu.memory_space<vmem>>, vector<1x8x128xf32>,
    %c5_i32 = arith.constant 5 : i32
    %206 = arith.index_cast %c5_i32 : i32 to index
    %c0_76 = arith.constant 0 : index
    %c0_77 = arith.constant 0 : index
    %207 = vector.load %arg1[%206, %c0_76, %c0_77] : memref<8x8x512xf32, #tpu.memory_space<vmem>>, vector<1x8x512xf32>
    %208 = vector.shape_cast %207 : vector<1x8x512xf32> to vector<8x512xf32>
    %cst_78 = arith.constant dense<0.000000e+00> : vector<8x512xf32>
    %209 = tpu.matmul %201, %3, %cst_78 {dimension_numbers = #tpu.dot_dimension_numbers<[1], [0], [0], [1], [0, 0, 1, 1], [], []>} : vector<8x128xf32>, vector<128x512xf32>, vector<8x512xf32> -> vector<8x512xf32>
    %210 = arith.addf %208, %209 : vector<8x512xf32>
    %211 = vector.extract_strided_slice %210 {offsets = [0, 0], sizes = [8, 128], strides = [1, 1]} : vector<8x512xf32> to vector<8x128xf32>
    %cst_79 = arith.constant 5.000000e-01 : f32
    %212 = vector.broadcast %cst_79 : f32 to vector<8x128xf32>
    %213 = arith.mulf %212, %211 : vector<8x128xf32>
    %214 = math.tanh %213 : vector<8x128xf32>
    %cst_80 = arith.constant 5.000000e-01 : f32
    %215 = vector.broadcast %cst_80 : f32 to vector<8x128xf32>
    %216 = arith.mulf %215, %214 : vector<8x128xf32>
    %cst_81 = arith.constant 5.000000e-01 : f32
    %217 = vector.broadcast %cst_81 : f32 to vector<8x128xf32>
    %218 = arith.addf %216, %217 : vector<8x128xf32>
    %219 = vector.extract_strided_slice %210 {offsets = [0, 128], sizes = [8, 128], strides = [1, 1]} : vector<8x512xf32> to vector<8x128xf32>
    %cst_82 = arith.constant 5.000000e-01 : f32
    %220 = vector.broadcast %cst_82 : f32 to vector<8x128xf32>
    %221 = arith.mulf %220, %219 : vector<8x128xf32>
    %222 = math.tanh %221 : vector<8x128xf32>
    %cst_83 = arith.constant 5.000000e-01 : f32
    %223 = vector.broadcast %cst_83 : f32 to vector<8x128xf32>
    %224 = arith.mulf %223, %222 : vector<8x128xf32>
    %cst_84 = arith.constant 5.000000e-01 : f32
    %225 = vector.broadcast %cst_84 : f32 to vector<8x128xf32>
    %226 = arith.addf %224, %225 : vector<8x128xf32>
    %227 = vector.extract_strided_slice %210 {offsets = [0, 256], sizes = [8, 128], strides = [1, 1]} : vector<8x512xf32> to vector<8x128xf32>
    %228 = math.tanh %227 : vector<8x128xf32>
    %229 = vector.extract_strided_slice %210 {offsets = [0, 384], sizes = [8, 128], strides = [1, 1]} : vector<8x512xf32> to vector<8x128xf32>
    %cst_85 = arith.constant 5.000000e-01 : f32
    %230 = vector.broadcast %cst_85 : f32 to vector<8x128xf32>
    %231 = arith.mulf %230, %229 : vector<8x128xf32>
    %232 = math.tanh %231 : vector<8x128xf32>
    %cst_86 = arith.constant 5.000000e-01 : f32
    %233 = vector.broadcast %cst_86 : f32 to vector<8x128xf32>
    %234 = arith.mulf %233, %232 : vector<8x128xf32>
    %cst_87 = arith.constant 5.000000e-01 : f32
    %235 = vector.broadcast %cst_87 : f32 to vector<8x128xf32>
    %236 = arith.addf %234, %235 : vector<8x128xf32>
    %237 = arith.mulf %226, %199 : vector<8x128xf32>
    %238 = arith.mulf %218, %228 : vector<8x128xf32>
    %239 = arith.addf %237, %238 : vector<8x128xf32>
    %240 = math.tanh %239 : vector<8x128xf32>
    %241 = arith.mulf %236, %240 : vector<8x128xf32>
    %242 = arith.index_cast %c5_i32 : i32 to index
    %c0_88 = arith.constant 0 : index
    %c0_89 = arith.constant 0 : index
    %243 = vector.load %arg5[%242, %c0_88, %c0_89] : memref<8x8x128xf32, #tpu.memory_space<vmem>>, vector<1x8x128xf32>
    %244 = vector.shape_cast %243 : vector<1x8x128xf32> to vector<8x128xf32>
    %245 = vector.shape_cast %241 : vector<8x128xf32> to vector<1x8x128xf32>
    tpu.vector_store %arg5[%242, %c0_88, %c0_89], %245 {strides = array<i32>} : memref<8x8x128xf32, #tpu.memory_space<vmem>>, vector<1x8x128xf32>,
    %c6_i32 = arith.constant 6 : i32
    %246 = arith.index_cast %c6_i32 : i32 to index
    %c0_90 = arith.constant 0 : index
    %c0_91 = arith.constant 0 : index
    %247 = vector.load %arg1[%246, %c0_90, %c0_91] : memref<8x8x512xf32, #tpu.memory_space<vmem>>, vector<1x8x512xf32>
    %248 = vector.shape_cast %247 : vector<1x8x512xf32> to vector<8x512xf32>
    %cst_92 = arith.constant dense<0.000000e+00> : vector<8x512xf32>
    %249 = tpu.matmul %241, %3, %cst_92 {dimension_numbers = #tpu.dot_dimension_numbers<[1], [0], [0], [1], [0, 0, 1, 1], [], []>} : vector<8x128xf32>, vector<128x512xf32>, vector<8x512xf32> -> vector<8x512xf32>
    %250 = arith.addf %248, %249 : vector<8x512xf32>
    %251 = vector.extract_strided_slice %250 {offsets = [0, 0], sizes = [8, 128], strides = [1, 1]} : vector<8x512xf32> to vector<8x128xf32>
    %cst_93 = arith.constant 5.000000e-01 : f32
    %252 = vector.broadcast %cst_93 : f32 to vector<8x128xf32>
    %253 = arith.mulf %252, %251 : vector<8x128xf32>
    %254 = math.tanh %253 : vector<8x128xf32>
    %cst_94 = arith.constant 5.000000e-01 : f32
    %255 = vector.broadcast %cst_94 : f32 to vector<8x128xf32>
    %256 = arith.mulf %255, %254 : vector<8x128xf32>
    %cst_95 = arith.constant 5.000000e-01 : f32
    %257 = vector.broadcast %cst_95 : f32 to vector<8x128xf32>
    %258 = arith.addf %256, %257 : vector<8x128xf32>
    %259 = vector.extract_strided_slice %250 {offsets = [0, 128], sizes = [8, 128], strides = [1, 1]} : vector<8x512xf32> to vector<8x128xf32>
    %cst_96 = arith.constant 5.000000e-01 : f32
    %260 = vector.broadcast %cst_96 : f32 to vector<8x128xf32>
    %261 = arith.mulf %260, %259 : vector<8x128xf32>
    %262 = math.tanh %261 : vector<8x128xf32>
    %cst_97 = arith.constant 5.000000e-01 : f32
    %263 = vector.broadcast %cst_97 : f32 to vector<8x128xf32>
    %264 = arith.mulf %263, %262 : vector<8x128xf32>
    %cst_98 = arith.constant 5.000000e-01 : f32
    %265 = vector.broadcast %cst_98 : f32 to vector<8x128xf32>
    %266 = arith.addf %264, %265 : vector<8x128xf32>
    %267 = vector.extract_strided_slice %250 {offsets = [0, 256], sizes = [8, 128], strides = [1, 1]} : vector<8x512xf32> to vector<8x128xf32>
    %268 = math.tanh %267 : vector<8x128xf32>
    %269 = vector.extract_strided_slice %250 {offsets = [0, 384], sizes = [8, 128], strides = [1, 1]} : vector<8x512xf32> to vector<8x128xf32>
    %cst_99 = arith.constant 5.000000e-01 : f32
    %270 = vector.broadcast %cst_99 : f32 to vector<8x128xf32>
    %271 = arith.mulf %270, %269 : vector<8x128xf32>
    %272 = math.tanh %271 : vector<8x128xf32>
    %cst_100 = arith.constant 5.000000e-01 : f32
    %273 = vector.broadcast %cst_100 : f32 to vector<8x128xf32>
    %274 = arith.mulf %273, %272 : vector<8x128xf32>
    %cst_101 = arith.constant 5.000000e-01 : f32
    %275 = vector.broadcast %cst_101 : f32 to vector<8x128xf32>
    %276 = arith.addf %274, %275 : vector<8x128xf32>
    %277 = arith.mulf %266, %239 : vector<8x128xf32>
    %278 = arith.mulf %258, %268 : vector<8x128xf32>
    %279 = arith.addf %277, %278 : vector<8x128xf32>
    %280 = math.tanh %279 : vector<8x128xf32>
    %281 = arith.mulf %276, %280 : vector<8x128xf32>
    %282 = arith.index_cast %c6_i32 : i32 to index
    %c0_102 = arith.constant 0 : index
    %c0_103 = arith.constant 0 : index
    %283 = vector.load %arg5[%282, %c0_102, %c0_103] : memref<8x8x128xf32, #tpu.memory_space<vmem>>, vector<1x8x128xf32>
    %284 = vector.shape_cast %283 : vector<1x8x128xf32> to vector<8x128xf32>
    %285 = vector.shape_cast %281 : vector<8x128xf32> to vector<1x8x128xf32>
    tpu.vector_store %arg5[%282, %c0_102, %c0_103], %285 {strides = array<i32>} : memref<8x8x128xf32, #tpu.memory_space<vmem>>, vector<1x8x128xf32>,
    %c7_i32 = arith.constant 7 : i32
    %286 = arith.index_cast %c7_i32 : i32 to index
    %c0_104 = arith.constant 0 : index
    %c0_105 = arith.constant 0 : index
    %287 = vector.load %arg1[%286, %c0_104, %c0_105] : memref<8x8x512xf32, #tpu.memory_space<vmem>>, vector<1x8x512xf32>
    %288 = vector.shape_cast %287 : vector<1x8x512xf32> to vector<8x512xf32>
    %cst_106 = arith.constant dense<0.000000e+00> : vector<8x512xf32>
    %289 = tpu.matmul %281, %3, %cst_106 {dimension_numbers = #tpu.dot_dimension_numbers<[1], [0], [0], [1], [0, 0, 1, 1], [], []>} : vector<8x128xf32>, vector<128x512xf32>, vector<8x512xf32> -> vector<8x512xf32>
    %290 = arith.addf %288, %289 : vector<8x512xf32>
    %291 = vector.extract_strided_slice %290 {offsets = [0, 0], sizes = [8, 128], strides = [1, 1]} : vector<8x512xf32> to vector<8x128xf32>
    %cst_107 = arith.constant 5.000000e-01 : f32
    %292 = vector.broadcast %cst_107 : f32 to vector<8x128xf32>
    %293 = arith.mulf %292, %291 : vector<8x128xf32>
    %294 = math.tanh %293 : vector<8x128xf32>
    %cst_108 = arith.constant 5.000000e-01 : f32
    %295 = vector.broadcast %cst_108 : f32 to vector<8x128xf32>
    %296 = arith.mulf %295, %294 : vector<8x128xf32>
    %cst_109 = arith.constant 5.000000e-01 : f32
    %297 = vector.broadcast %cst_109 : f32 to vector<8x128xf32>
    %298 = arith.addf %296, %297 : vector<8x128xf32>
    %299 = vector.extract_strided_slice %290 {offsets = [0, 128], sizes = [8, 128], strides = [1, 1]} : vector<8x512xf32> to vector<8x128xf32>
    %cst_110 = arith.constant 5.000000e-01 : f32
    %300 = vector.broadcast %cst_110 : f32 to vector<8x128xf32>
    %301 = arith.mulf %300, %299 : vector<8x128xf32>
    %302 = math.tanh %301 : vector<8x128xf32>
    %cst_111 = arith.constant 5.000000e-01 : f32
    %303 = vector.broadcast %cst_111 : f32 to vector<8x128xf32>
    %304 = arith.mulf %303, %302 : vector<8x128xf32>
    %cst_112 = arith.constant 5.000000e-01 : f32
    %305 = vector.broadcast %cst_112 : f32 to vector<8x128xf32>
    %306 = arith.addf %304, %305 : vector<8x128xf32>
    %307 = vector.extract_strided_slice %290 {offsets = [0, 256], sizes = [8, 128], strides = [1, 1]} : vector<8x512xf32> to vector<8x128xf32>
    %308 = math.tanh %307 : vector<8x128xf32>
    %309 = vector.extract_strided_slice %290 {offsets = [0, 384], sizes = [8, 128], strides = [1, 1]} : vector<8x512xf32> to vector<8x128xf32>
    %cst_113 = arith.constant 5.000000e-01 : f32
    %310 = vector.broadcast %cst_113 : f32 to vector<8x128xf32>
    %311 = arith.mulf %310, %309 : vector<8x128xf32>
    %312 = math.tanh %311 : vector<8x128xf32>
    %cst_114 = arith.constant 5.000000e-01 : f32
    %313 = vector.broadcast %cst_114 : f32 to vector<8x128xf32>
    %314 = arith.mulf %313, %312 : vector<8x128xf32>
    %cst_115 = arith.constant 5.000000e-01 : f32
    %315 = vector.broadcast %cst_115 : f32 to vector<8x128xf32>
    %316 = arith.addf %314, %315 : vector<8x128xf32>
    %317 = arith.mulf %306, %279 : vector<8x128xf32>
    %318 = arith.mulf %298, %308 : vector<8x128xf32>
    %319 = arith.addf %317, %318 : vector<8x128xf32>
    %320 = math.tanh %319 : vector<8x128xf32>
    %321 = arith.mulf %316, %320 : vector<8x128xf32>
    %322 = arith.index_cast %c7_i32 : i32 to index
    %c0_116 = arith.constant 0 : index
    %c0_117 = arith.constant 0 : index
    %323 = vector.load %arg5[%322, %c0_116, %c0_117] : memref<8x8x128xf32, #tpu.memory_space<vmem>>, vector<1x8x128xf32>
    %324 = vector.shape_cast %323 : vector<1x8x128xf32> to vector<8x128xf32>
    %325 = vector.shape_cast %321 : vector<8x128xf32> to vector<1x8x128xf32>
    tpu.vector_store %arg5[%322, %c0_116, %c0_117], %325 {strides = array<i32>} : memref<8x8x128xf32, #tpu.memory_space<vmem>>, vector<1x8x128xf32>,
    %c8_i32 = arith.constant 8 : i32
    %c0_118 = arith.constant 0 : index
    %c0_119 = arith.constant 0 : index
    %326 = vector.load %arg8[%c0_118, %c0_119] : memref<8x128xf32, #tpu.memory_space<vmem>>, vector<8x128xf32>
    tpu.vector_store %arg8[%c0_118, %c0_119], %321 {strides = array<i32>} : memref<8x128xf32, #tpu.memory_space<vmem>>, vector<8x128xf32>,
    %c0_120 = arith.constant 0 : index
    %c0_121 = arith.constant 0 : index
    %327 = vector.load %arg9[%c0_120, %c0_121] : memref<8x128xf32, #tpu.memory_space<vmem>>, vector<8x128xf32>
    tpu.vector_store %arg9[%c0_120, %c0_121], %319 {strides = array<i32>} : memref<8x128xf32, #tpu.memory_space<vmem>>, vector<8x128xf32>,
    %c0_i32_122 = arith.constant 0 : i32
    %328 = arith.cmpi eq, %arg0, %c0_i32_122 : i32
    %329 = arith.extui %328 : i1 to i32
    %c0_i32_123 = arith.constant 0 : i32
    %330 = arith.cmpi ne, %329, %c0_i32_123 : i32
    scf.if %330 {
      %c0_124 = arith.constant 0 : index
      %c0_125 = arith.constant 0 : index
      %331 = vector.load %arg6[%c0_124, %c0_125] : memref<8x128xf32, #tpu.memory_space<vmem>>, vector<8x128xf32>
      tpu.vector_store %arg6[%c0_124, %c0_125], %321 {strides = array<i32>} : memref<8x128xf32, #tpu.memory_space<vmem>>, vector<8x128xf32>,
      %c0_126 = arith.constant 0 : index
      %c0_127 = arith.constant 0 : index
      %332 = vector.load %arg7[%c0_126, %c0_127] : memref<8x128xf32, #tpu.memory_space<vmem>>, vector<8x128xf32>
      tpu.vector_store %arg7[%c0_126, %c0_127], %319 {strides = array<i32>} : memref<8x128xf32, #tpu.memory_space<vmem>>, vector<8x128xf32>,
    } else {
    }
    return
  }
  func.func @transform_0(%arg0: i32) -> (i32, i32, i32) {
    %c0_i32 = arith.constant 0 : i32
    %c0_i32_0 = arith.constant 0 : i32
    %c0_i32_1 = arith.constant 0 : i32
    return %arg0, %c0_i32, %c0_i32_0 : i32, i32, i32
  }
  func.func @transform_1(%arg0: i32) -> (i32, i32) {
    %c0_i32 = arith.constant 0 : i32
    %c0_i32_0 = arith.constant 0 : i32
    %c0_i32_1 = arith.constant 0 : i32
    return %c0_i32, %c0_i32_0 : i32, i32
  }
  func.func @transform_2(%arg0: i32) -> (i32, i32) {
    %c0_i32 = arith.constant 0 : i32
    %c0_i32_0 = arith.constant 0 : i32
    %c0_i32_1 = arith.constant 0 : i32
    return %c0_i32, %c0_i32_0 : i32, i32
  }
  func.func @transform_3(%arg0: i32) -> (i32, i32) {
    %c0_i32 = arith.constant 0 : i32
    %c0_i32_0 = arith.constant 0 : i32
    %c0_i32_1 = arith.constant 0 : i32
    return %c0_i32, %c0_i32_0 : i32, i32
  }
  func.func @transform_4(%arg0: i32) -> (i32, i32, i32) {
    %c0_i32 = arith.constant 0 : i32
    %c0_i32_0 = arith.constant 0 : i32
    %c0_i32_1 = arith.constant 0 : i32
    return %arg0, %c0_i32, %c0_i32_0 : i32, i32, i32
  }
  func.func @transform_5(%arg0: i32) -> (i32, i32) {
    %c0_i32 = arith.constant 0 : i32
    %c0_i32_0 = arith.constant 0 : i32
    %c0_i32_1 = arith.constant 0 : i32
    return %c0_i32, %c0_i32_0 : i32, i32
  }
  func.func @transform_6(%arg0: i32) -> (i32, i32) {
    %c0_i32 = arith.constant 0 : i32
    %c0_i32_0 = arith.constant 0 : i32
    %c0_i32_1 = arith.constant 0 : i32
    return %c0_i32, %c0_i32_0 : i32, i32
  }
}

</mosaic_0001>

<llo_original>
// kernel: dlstm_forward_pallas.2
$region0: #{dlstm_forward_pallas.2}
  #allocation0 [shape = 'u32[]', space=smem, size = 0x4, offset = 0x4, fixed_abs, tag = 'smem constant byte address 0x4 - core index']
  #allocation1 [shape = 'u32[72,128]{1,0:T(1,128)}', space=vmem, size = 0x9000, scoped, tag = 'internal scratch']
  #allocation2 [shape = 'f32[8,128]{1,0:T(8,128)}', space=vmem, size = 0x1000, scoped, tag = 'scratch operand']
  #allocation3 [shape = 'f32[8,128]{1,0:T(8,128)}', space=vmem, size = 0x1000, scoped, tag = 'scratch operand']
  %s0 = inlined_call_operand.vmem [shape: f32[8,8,512], index: 0, kind: input, shape index: {}]
  %s1 = inlined_call_operand.vmem [shape: f32[128,512], index: 1, kind: input, shape index: {}]
  %s2 = inlined_call_operand.vmem [shape: f32[8,128], index: 2, kind: input, shape index: {}]
  %s3 = inlined_call_operand.vmem [shape: f32[8,128], index: 3, kind: input, shape index: {}]
  %s4 = inlined_call_operand.vmem [shape: f32[8,8,128], index: 4, kind: output, shape index: {0}]
  %s5 = inlined_call_operand.vmem [shape: f32[8,128], index: 5, kind: output, shape index: {1}]
  %s6 = inlined_call_operand.vmem [shape: f32[8,128], index: 6, kind: output, shape index: {2}]
  %7 = xla_tuple %s4, %s5, %s6
  %s8 = sld [smem:[#allocation0]]
  $region50: #{dlstm_forward_pallas.2} parent=0
    _
  %s10 = ssub.s32 1, %s8
  %s11 = scalar_select 0, %s10, %s8
  // Predicated region
  $region2: #{dlstm_forward_pallas.2} parent=0 // pred_check
    _
  $region3: #{dlstm_forward_pallas.2} parent=0 // pred_check_branch
    %13 = sbr.rel (0) target = $region5
  $region4: #{dlstm_forward_pallas.2} parent=0 // pred_region
    _
  $region5: #{dlstm_forward_pallas.2} parent=0 // pred_fallthru
    _
  // Predicated region
  $region6: #{dlstm_forward_pallas.2} parent=0 // pred_check
    _
  $region7: #{dlstm_forward_pallas.2} parent=0 // pred_check_branch
    %15 = sbr.rel (0) target = $region9
  $region8: #{dlstm_forward_pallas.2} parent=0 // pred_region
    _
  $region9: #{dlstm_forward_pallas.2} parent=0 // pred_fallthru
    _
  // Predicated region
  $region10: #{dlstm_forward_pallas.2} parent=0 // pred_check
    _
  $region11: #{dlstm_forward_pallas.2} parent=0 // pred_check_branch
    %17 = sbr.rel (0) target = $region13
  $region12: #{dlstm_forward_pallas.2} parent=0 // pred_region
    _
  $region13: #{dlstm_forward_pallas.2} parent=0 // pred_fallthru
    _
  // Predicated region
  $region14: #{dlstm_forward_pallas.2} parent=0 // pred_check
    _
  $region15: #{dlstm_forward_pallas.2} parent=0 // pred_check_branch
    %19 = sbr.rel (0) target = $region17
  $region16: #{dlstm_forward_pallas.2} parent=0 // pred_region
    _
  $region17: #{dlstm_forward_pallas.2} parent=0 // pred_fallthru
    _
  %p20 = scmp.eq.s32.totalorder 0, 0
  // Predicated region
  $region18: #{dlstm_forward_pallas.2} parent=0 // pred_check
    %p21 = pneg %p20
  $region19: #{dlstm_forward_pallas.2} parent=0 // pred_check_branch
    %23 = sbr.rel (%p21) target = $region21
  $region20: #{dlstm_forward_pallas.2} parent=0 // pred_region
    %v24 = vld [vmem:[%s2] sm:$0xff]
    %25 = vst [vmem:[#allocation2] sm:$0xff] %v24
    %v26 = vld [vmem:[%s3] sm:$0xff]
    %27 = vst [vmem:[#allocation3] sm:$0xff] %v26
  $region21: #{dlstm_forward_pallas.2} parent=0 // pred_fallthru
    _
  %v28 = vld [vmem:[%s1] sm:$0xff]
  %v29 = vld [vmem:[%s1 + $0x8] sm:$0xff]
  %v30 = vld [vmem:[%s1 + $0x10] sm:$0xff]
  %v31 = vld [vmem:[%s1 + $0x18] sm:$0xff]
  %v32 = vld [vmem:[%s1 + $0x20] sm:$0xff]
  %v33 = vld [vmem:[%s1 + $0x28] sm:$0xff]
  %v34 = vld [vmem:[%s1 + $0x30] sm:$0xff]
  %v35 = vld [vmem:[%s1 + $0x38] sm:$0xff]
  %v36 = vld [vmem:[%s1 + $0x40] sm:$0xff]
  %v37 = vld [vmem:[%s1 + $0x48] sm:$0xff]
  %v38 = vld [vmem:[%s1 + $0x50] sm:$0xff]
  %v39 = vld [vmem:[%s1 + $0x58] sm:$0xff]
  %v40 = vld [vmem:[%s1 + $0x60] sm:$0xff]
  %v41 = vld [vmem:[%s1 + $0x68] sm:$0xff]
  %v42 = vld [vmem:[%s1 + $0x70] sm:$0xff]
  %v43 = vld [vmem:[%s1 + $0x78] sm:$0xff]
  %v44 = vld [vmem:[%s1 + $0x80] sm:$0xff]
  %v45 = vld [vmem:[%s1 + $0x88] sm:$0xff]
  %v46 = vld [vmem:[%s1 + $0x90] sm:$0xff]
  %v47 = vld [vmem:[%s1 + $0x98] sm:$0xff]
  %v48 = vld [vmem:[%s1 + $0xa0] sm:$0xff]
  %v49 = vld [vmem:[%s1 + $0xa8] sm:$0xff]
  %v50 = vld [vmem:[%s1 + $0xb0] sm:$0xff]
  %v51 = vld [vmem:[%s1 + $0xb8] sm:$0xff]
  %v52 = vld [vmem:[%s1 + $0xc0] sm:$0xff]
  %v53 = vld [vmem:[%s1 + $0xc8] sm:$0xff]
  %v54 = vld [vmem:[%s1 + $0xd0] sm:$0xff]
  %v55 = vld [vmem:[%s1 + $0xd8] sm:$0xff]
  %v56 = vld [vmem:[%s1 + $0xe0] sm:$0xff]
  %v57 = vld [vmem:[%s1 + $0xe8] sm:$0xff]
  %v58 = vld [vmem:[%s1 + $0xf0] sm:$0xff]
  %v59 = vld [vmem:[%s1 + $0xf8] sm:$0xff]
  %v60 = vld [vmem:[%s1 + $0x100] sm:$0xff]
  %v61 = vld [vmem:[%s1 + $0x108] sm:$0xff]
  %v62 = vld [vmem:[%s1 + $0x110] sm:$0xff]
  %v63 = vld [vmem:[%s1 + $0x118] sm:$0xff]
  %v64 = vld [vmem:[%s1 + $0x120] sm:$0xff]
  %v65 = vld [vmem:[%s1 + $0x128] sm:$0xff]
  %v66 = vld [vmem:[%s1 + $0x130] sm:$0xff]
  %v67 = vld [vmem:[%s1 + $0x138] sm:$0xff]
  %v68 = vld [vmem:[%s1 + $0x140] sm:$0xff]
  %v69 = vld [vmem:[%s1 + $0x148] sm:$0xff]
  %v70 = vld [vmem:[%s1 + $0x150] sm:$0xff]
  %v71 = vld [vmem:[%s1 + $0x158] sm:$0xff]
  %v72 = vld [vmem:[%s1 + $0x160] sm:$0xff]
  %v73 = vld [vmem:[%s1 + $0x168] sm:$0xff]
  %v74 = vld [vmem:[%s1 + $0x170] sm:$0xff]
  %v75 = vld [vmem:[%s1 + $0x178] sm:$0xff]
  %v76 = vld [vmem:[%s1 + $0x180] sm:$0xff]
  %v77 = vld [vmem:[%s1 + $0x188] sm:$0xff]
  %v78 = vld [vmem:[%s1 + $0x190] sm:$0xff]
  %v79 = vld [vmem:[%s1 + $0x198] sm:$0xff]
  %v80 = vld [vmem:[%s1 + $0x1a0] sm:$0xff]
  %v81 = vld [vmem:[%s1 + $0x1a8] sm:$0xff]
  %v82 = vld [vmem:[%s1 + $0x1b0] sm:$0xff]
  %v83 = vld [vmem:[%s1 + $0x1b8] sm:$0xff]
  %v84 = vld [vmem:[%s1 + $0x1c0] sm:$0xff]
  %v85 = vld [vmem:[%s1 + $0x1c8] sm:$0xff]
  %v86 = vld [vmem:[%s1 + $0x1d0] sm:$0xff]
  %v87 = vld [vmem:[%s1 + $0x1d8] sm:$0xff]
  %v88 = vld [vmem:[%s1 + $0x1e0] sm:$0xff]
  %v89 = vld [vmem:[%s1 + $0x1e8] sm:$0xff]
  %v90 = vld [vmem:[%s1 + $0x1f0] sm:$0xff]
  %v91 = vld [vmem:[%s1 + $0x1f8] sm:$0xff]
  %v92 = vld [vmem:[#allocation2] sm:$0xff]
  %v93 = vld [vmem:[#allocation3] sm:$0xff]
  %v94 = vld [vmem:[%s0] sm:$0xff]
  %v95 = vld [vmem:[%s0 + $0x8] sm:$0xff]
  %v96 = vld [vmem:[%s0 + $0x10] sm:$0xff]
  %v97 = vld [vmem:[%s0 + $0x18] sm:$0xff]
  %98 = vmatpush.msra.mxu0 %v88
  %99 = vmatpush.msra.mxu0 %v84
  %100 = vmatpush.msra.mxu0 %v80
  %101 = vmatpush.msra.mxu0 %v76
  %102 = vmatpush.msra.mxu0 %v72
  %103 = vmatpush.msra.mxu0 %v68
  %104 = vmatpush.msra.mxu0 %v64
  %105 = vmatpush.msra.mxu0 %v60
  %106 = vmatpush.msra.mxu0 %v56
  %107 = vmatpush.msra.mxu0 %v52
  %108 = vmatpush.msra.mxu0 %v48
  %109 = vmatpush.msra.mxu0 %v44
  %110 = vmatpush.msra.mxu0 %v40
  %111 = vmatpush.msra.mxu0 %v36
  %112 = vmatpush.msra.mxu0 %v32
  %113 = vmatpush.msra.mxu0 %v28
  %114 = vmatmul.f32.gmra.mxu0 %v92
  %v115 = vpop.f32.mrf.mxu0
  %v116 = vadd.f32 0.0, %v115
  %117 = vdwg.mxu0
  %118 = vmatpush.msra.mxu0 %v89
  %119 = vmatpush.msra.mxu0 %v85
  %120 = vmatpush.msra.mxu0 %v81
  %121 = vmatpush.msra.mxu0 %v77
  %122 = vmatpush.msra.mxu0 %v73
  %123 = vmatpush.msra.mxu0 %v69
  %124 = vmatpush.msra.mxu0 %v65
  %125 = vmatpush.msra.mxu0 %v61
  %126 = vmatpush.msra.mxu0 %v57
  %127 = vmatpush.msra.mxu0 %v53
  %128 = vmatpush.msra.mxu0 %v49
  %129 = vmatpush.msra.mxu0 %v45
  %130 = vmatpush.msra.mxu0 %v41
  %131 = vmatpush.msra.mxu0 %v37
  %132 = vmatpush.msra.mxu0 %v33
  %133 = vmatpush.msra.mxu0 %v29
  %134 = vmatmul.f32.gmra.mxu0 %v92
  %v135 = vpop.f32.mrf.mxu0
  %v136 = vadd.f32 0.0, %v135
  %137 = vdwg.mxu0
  %138 = vmatpush.msra.mxu0 %v90
  %139 = vmatpush.msra.mxu0 %v86
  %140 = vmatpush.msra.mxu0 %v82
  %141 = vmatpush.msra.mxu0 %v78
  %142 = vmatpush.msra.mxu0 %v74
  %143 = vmatpush.msra.mxu0 %v70
  %144 = vmatpush.msra.mxu0 %v66
  %145 = vmatpush.msra.mxu0 %v62
  %146 = vmatpush.msra.mxu0 %v58
  %147 = vmatpush.msra.mxu0 %v54
  %148 = vmatpush.msra.mxu0 %v50
  %149 = vmatpush.msra.mxu0 %v46
  %150 = vmatpush.msra.mxu0 %v42
  %151 = vmatpush.msra.mxu0 %v38
  %152 = vmatpush.msra.mxu0 %v34
  %153 = vmatpush.msra.mxu0 %v30
  %154 = vmatmul.f32.gmra.mxu0 %v92
  %v155 = vpop.f32.mrf.mxu0
  %v156 = vadd.f32 0.0, %v155
  %157 = vdwg.mxu0
  %158 = vmatpush.msra.mxu0 %v91
  %159 = vmatpush.msra.mxu0 %v87
  %160 = vmatpush.msra.mxu0 %v83
  %161 = vmatpush.msra.mxu0 %v79
  %162 = vmatpush.msra.mxu0 %v75
  %163 = vmatpush.msra.mxu0 %v71
  %164 = vmatpush.msra.mxu0 %v67
  %165 = vmatpush.msra.mxu0 %v63
  %166 = vmatpush.msra.mxu0 %v59
  %167 = vmatpush.msra.mxu0 %v55
  %168 = vmatpush.msra.mxu0 %v51
  %169 = vmatpush.msra.mxu0 %v47
  %170 = vmatpush.msra.mxu0 %v43
  %171 = vmatpush.msra.mxu0 %v39
  %172 = vmatpush.msra.mxu0 %v35
  %173 = vmatpush.msra.mxu0 %v31
  %174 = vmatmul.f32.gmra.mxu0 %v92
  %v175 = vpop.f32.mrf.mxu0
  %v176 = vadd.f32 0.0, %v175
  %177 = vdwg.mxu0
  %v178 = vadd.f32 %v94, %v116
  %v179 = vadd.f32 %v95, %v136
  %v180 = vadd.f32 %v96, %v156
  %v181 = vadd.f32 %v97, %v176
  %v182 = vmul.f32 %v178, 0.5
  %v183 = vtanh.pop %v182
  %v184 = vmul.f32 %v183, 0.5
  %v185 = vadd.f32 %v184, 0.5
  %v186 = vmul.f32 %v179, 0.5
  %v187 = vtanh.pop %v186
  %v188 = vmul.f32 %v187, 0.5
  %v189 = vadd.f32 %v188, 0.5
  %v190 = vtanh.pop %v180
  %v191 = vmul.f32 %v181, 0.5
  %v192 = vtanh.pop %v191
  %v193 = vmul.f32 %v192, 0.5
  %v194 = vadd.f32 %v193, 0.5
  %v195 = vmul.f32 %v189, %v93
  %v196 = vmul.f32 %v185, %v190
  %v197 = vadd.f32 %v195, %v196
  %v198 = vtanh.pop %v197
  %v199 = vmul.f32 %v194, %v198
  %200 = vst [vmem:[%s4] sm:$0xff] %v199
  %s201 = scalar_lea.vmem %s0, 32
  %v202 = vld [vmem:[%s201] sm:$0xff]
  %v203 = vld [vmem:[%s201 + $0x8] sm:$0xff]
  %v204 = vld [vmem:[%s201 + $0x10] sm:$0xff]
  %v205 = vld [vmem:[%s201 + $0x18] sm:$0xff]
  %206 = vmatpush.msra.mxu0 %v88
  %207 = vmatpush.msra.mxu0 %v84
  %208 = vmatpush.msra.mxu0 %v80
  %209 = vmatpush.msra.mxu0 %v76
  %210 = vmatpush.msra.mxu0 %v72
  %211 = vmatpush.msra.mxu0 %v68
  %212 = vmatpush.msra.mxu0 %v64
  %213 = vmatpush.msra.mxu0 %v60
  %214 = vmatpush.msra.mxu0 %v56
  %215 = vmatpush.msra.mxu0 %v52
  %216 = vmatpush.msra.mxu0 %v48
  %217 = vmatpush.msra.mxu0 %v44
  %218 = vmatpush.msra.mxu0 %v40
  %219 = vmatpush.msra.mxu0 %v36
  %220 = vmatpush.msra.mxu0 %v32
  %221 = vmatpush.msra.mxu0 %v28
  %222 = vmatmul.f32.gmra.mxu0 %v199
  %v223 = vpop.f32.mrf.mxu0
  %v224 = vadd.f32 0.0, %v223
  %225 = vdwg.mxu0
  %226 = vmatpush.msra.mxu0 %v89
  %227 = vmatpush.msra.mxu0 %v85
  %228 = vmatpush.msra.mxu0 %v81
  %229 = vmatpush.msra.mxu0 %v77
  %230 = vmatpush.msra.mxu0 %v73
  %231 = vmatpush.msra.mxu0 %v69
  %232 = vmatpush.msra.mxu0 %v65
  %233 = vmatpush.msra.mxu0 %v61
  %234 = vmatpush.msra.mxu0 %v57
  %235 = vmatpush.msra.mxu0 %v53
  %236 = vmatpush.msra.mxu0 %v49
  %237 = vmatpush.msra.mxu0 %v45
  %238 = vmatpush.msra.mxu0 %v41
  %239 = vmatpush.msra.mxu0 %v37
  %240 = vmatpush.msra.mxu0 %v33
  %241 = vmatpush.msra.mxu0 %v29
  %242 = vmatmul.f32.gmra.mxu0 %v199
  %v243 = vpop.f32.mrf.mxu0
  %v244 = vadd.f32 0.0, %v243
  %245 = vdwg.mxu0
  %246 = vmatpush.msra.mxu0 %v90
  %247 = vmatpush.msra.mxu0 %v86
  %248 = vmatpush.msra.mxu0 %v82
  %249 = vmatpush.msra.mxu0 %v78
  %250 = vmatpush.msra.mxu0 %v74
  %251 = vmatpush.msra.mxu0 %v70
  %252 = vmatpush.msra.mxu0 %v66
  %253 = vmatpush.msra.mxu0 %v62
  %254 = vmatpush.msra.mxu0 %v58
  %255 = vmatpush.msra.mxu0 %v54
  %256 = vmatpush.msra.mxu0 %v50
  %257 = vmatpush.msra.mxu0 %v46
  %258 = vmatpush.msra.mxu0 %v42
  %259 = vmatpush.msra.mxu0 %v38
  %260 = vmatpush.msra.mxu0 %v34
  %261 = vmatpush.msra.mxu0 %v30
  %262 = vmatmul.f32.gmra.mxu0 %v199
  %v263 = vpop.f32.mrf.mxu0
  %v264 = vadd.f32 0.0, %v263
  %265 = vdwg.mxu0
  %266 = vmatpush.msra.mxu0 %v91
  %267 = vmatpush.msra.mxu0 %v87
  %268 = vmatpush.msra.mxu0 %v83
  %269 = vmatpush.msra.mxu0 %v79
  %270 = vmatpush.msra.mxu0 %v75
  %271 = vmatpush.msra.mxu0 %v71
  %272 = vmatpush.msra.mxu0 %v67
  %273 = vmatpush.msra.mxu0 %v63
  %274 = vmatpush.msra.mxu0 %v59
  %275 = vmatpush.msra.mxu0 %v55
  %276 = vmatpush.msra.mxu0 %v51
  %277 = vmatpush.msra.mxu0 %v47
  %278 = vmatpush.msra.mxu0 %v43
  %279 = vmatpush.msra.mxu0 %v39
  %280 = vmatpush.msra.mxu0 %v35
  %281 = vmatpush.msra.mxu0 %v31
  %282 = vmatmul.f32.gmra.mxu0 %v199
  %v283 = vpop.f32.mrf.mxu0
  %v284 = vadd.f32 0.0, %v283
  %285 = vdwg.mxu0
  %v286 = vadd.f32 %v202, %v224
  %v287 = vadd.f32 %v203, %v244
  %v288 = vadd.f32 %v204, %v264
  %v289 = vadd.f32 %v205, %v284
  %v290 = vmul.f32 %v286, 0.5
  %v291 = vtanh.pop %v290
  %v292 = vmul.f32 %v291, 0.5
  %v293 = vadd.f32 %v292, 0.5
  %v294 = vmul.f32 %v287, 0.5
  %v295 = vtanh.pop %v294
  %v296 = vmul.f32 %v295, 0.5
  %v297 = vadd.f32 %v296, 0.5
  %v298 = vtanh.pop %v288
  %v299 = vmul.f32 %v289, 0.5
  %v300 = vtanh.pop %v299
  %v301 = vmul.f32 %v300, 0.5
  %v302 = vadd.f32 %v301, 0.5
  %v303 = vmul.f32 %v297, %v197
  %v304 = vmul.f32 %v293, %v298
  %v305 = vadd.f32 %v303, %v304
  %v306 = vtanh.pop %v305
  %v307 = vmul.f32 %v302, %v306
  %s308 = scalar_lea.vmem %s4, 8
  %309 = vst [vmem:[%s308] sm:$0xff] %v307
  %s310 = scalar_lea.vmem %s0, 64
  %v311 = vld [vmem:[%s310] sm:$0xff]
  %v312 = vld [vmem:[%s310 + $0x8] sm:$0xff]
  %v313 = vld [vmem:[%s310 + $0x10] sm:$0xff]
  %v314 = vld [vmem:[%s310 + $0x18] sm:$0xff]
  %315 = vmatpush.msra.mxu0 %v88
  %316 = vmatpush.msra.mxu0 %v84
  %317 = vmatpush.msra.mxu0 %v80
  %318 = vmatpush.msra.mxu0 %v76
  %319 = vmatpush.msra.mxu0 %v72
  %320 = vmatpush.msra.mxu0 %v68
  %321 = vmatpush.msra.mxu0 %v64
  %322 = vmatpush.msra.mxu0 %v60
  %323 = vmatpush.msra.mxu0 %v56
  %324 = vmatpush.msra.mxu0 %v52
  %325 = vmatpush.msra.mxu0 %v48
  %326 = vmatpush.msra.mxu0 %v44
  %327 = vmatpush.msra.mxu0 %v40
  %328 = vmatpush.msra.mxu0 %v36
  %329 = vmatpush.msra.mxu0 %v32
  %330 = vmatpush.msra.mxu0 %v28
  %331 = vmatmul.f32.gmra.mxu0 %v307
  %v332 = vpop.f32.mrf.mxu0
  %v333 = vadd.f32 0.0, %v332
  %334 = vdwg.mxu0
  %335 = vmatpush.msra.mxu0 %v89
  %336 = vmatpush.msra.mxu0 %v85
  %337 = vmatpush.msra.mxu0 %v81
  %338 = vmatpush.msra.mxu0 %v77
  %339 = vmatpush.msra.mxu0 %v73
  %340 = vmatpush.msra.mxu0 %v69
  %341 = vmatpush.msra.mxu0 %v65
  %342 = vmatpush.msra.mxu0 %v61
  %343 = vmatpush.msra.mxu0 %v57
  %344 = vmatpush.msra.mxu0 %v53
  %345 = vmatpush.msra.mxu0 %v49
  %346 = vmatpush.msra.mxu0 %v45
  %347 = vmatpush.msra.mxu0 %v41
  %348 = vmatpush.msra.mxu0 %v37
  %349 = vmatpush.msra.mxu0 %v33
  %350 = vmatpush.msra.mxu0 %v29
  %351 = vmatmul.f32.gmra.mxu0 %v307
  %v352 = vpop.f32.mrf.mxu0
  %v353 = vadd.f32 0.0, %v352
  %354 = vdwg.mxu0
  %355 = vmatpush.msra.mxu0 %v90
  %356 = vmatpush.msra.mxu0 %v86
  %357 = vmatpush.msra.mxu0 %v82
  %358 = vmatpush.msra.mxu0 %v78
  %359 = vmatpush.msra.mxu0 %v74
  %360 = vmatpush.msra.mxu0 %v70
  %361 = vmatpush.msra.mxu0 %v66
  %362 = vmatpush.msra.mxu0 %v62
  %363 = vmatpush.msra.mxu0 %v58
  %364 = vmatpush.msra.mxu0 %v54
  %365 = vmatpush.msra.mxu0 %v50
  %366 = vmatpush.msra.mxu0 %v46
  %367 = vmatpush.msra.mxu0 %v42
  %368 = vmatpush.msra.mxu0 %v38
  %369 = vmatpush.msra.mxu0 %v34
  %370 = vmatpush.msra.mxu0 %v30
  %371 = vmatmul.f32.gmra.mxu0 %v307
  %v372 = vpop.f32.mrf.mxu0
  %v373 = vadd.f32 0.0, %v372
  %374 = vdwg.mxu0
  %375 = vmatpush.msra.mxu0 %v91
  %376 = vmatpush.msra.mxu0 %v87
  %377 = vmatpush.msra.mxu0 %v83
  %378 = vmatpush.msra.mxu0 %v79
  %379 = vmatpush.msra.mxu0 %v75
  %380 = vmatpush.msra.mxu0 %v71
  %381 = vmatpush.msra.mxu0 %v67
  %382 = vmatpush.msra.mxu0 %v63
  %383 = vmatpush.msra.mxu0 %v59
  %384 = vmatpush.msra.mxu0 %v55
  %385 = vmatpush.msra.mxu0 %v51
  %386 = vmatpush.msra.mxu0 %v47
  %387 = vmatpush.msra.mxu0 %v43
  %388 = vmatpush.msra.mxu0 %v39
  %389 = vmatpush.msra.mxu0 %v35
  %390 = vmatpush.msra.mxu0 %v31
  %391 = vmatmul.f32.gmra.mxu0 %v307
  %v392 = vpop.f32.mrf.mxu0
  %v393 = vadd.f32 0.0, %v392
  %394 = vdwg.mxu0
  %v395 = vadd.f32 %v311, %v333
  %v396 = vadd.f32 %v312, %v353
  %v397 = vadd.f32 %v313, %v373
  %v398 = vadd.f32 %v314, %v393
  %v399 = vmul.f32 %v395, 0.5
  %v400 = vtanh.pop %v399
  %v401 = vmul.f32 %v400, 0.5
  %v402 = vadd.f32 %v401, 0.5
  %v403 = vmul.f32 %v396, 0.5
  %v404 = vtanh.pop %v403
  %v405 = vmul.f32 %v404, 0.5
  %v406 = vadd.f32 %v405, 0.5
  %v407 = vtanh.pop %v397
  %v408 = vmul.f32 %v398, 0.5
  %v409 = vtanh.pop %v408
  %v410 = vmul.f32 %v409, 0.5
  %v411 = vadd.f32 %v410, 0.5
  %v412 = vmul.f32 %v406, %v305
  %v413 = vmul.f32 %v402, %v407
  %v414 = vadd.f32 %v412, %v413
  %v415 = vtanh.pop %v414
  %v416 = vmul.f32 %v411, %v415
  %s417 = scalar_lea.vmem %s4, 16
  %418 = vst [vmem:[%s417] sm:$0xff] %v416
  %s419 = scalar_lea.vmem %s0, 96
  %v420 = vld [vmem:[%s419] sm:$0xff]
  %v421 = vld [vmem:[%s419 + $0x8] sm:$0xff]
  %v422 = vld [vmem:[%s419 + $0x10] sm:$0xff]
  %v423 = vld [vmem:[%s419 + $0x18] sm:$0xff]
  %424 = vmatpush.msra.mxu0 %v88
  %425 = vmatpush.msra.mxu0 %v84
  %426 = vmatpush.msra.mxu0 %v80
  %427 = vmatpush.msra.mxu0 %v76
  %428 = vmatpush.msra.mxu0 %v72
  %429 = vmatpush.msra.mxu0 %v68
  %430 = vmatpush.msra.mxu0 %v64
  %431 = vmatpush.msra.mxu0 %v60
  %432 = vmatpush.msra.mxu0 %v56
  %433 = vmatpush.msra.mxu0 %v52
  %434 = vmatpush.msra.mxu0 %v48
  %435 = vmatpush.msra.mxu0 %v44
  %436 = vmatpush.msra.mxu0 %v40
  %437 = vmatpush.msra.mxu0 %v36
  %438 = vmatpush.msra.mxu0 %v32
  %439 = vmatpush.msra.mxu0 %v28
  %440 = vmatmul.f32.gmra.mxu0 %v416
  %v441 = vpop.f32.mrf.mxu0
  %v442 = vadd.f32 0.0, %v441
  %443 = vdwg.mxu0
  %444 = vmatpush.msra.mxu0 %v89
  %445 = vmatpush.msra.mxu0 %v85
  %446 = vmatpush.msra.mxu0 %v81
  %447 = vmatpush.msra.mxu0 %v77
  %448 = vmatpush.msra.mxu0 %v73
  %449 = vmatpush.msra.mxu0 %v69
  %450 = vmatpush.msra.mxu0 %v65
  %451 = vmatpush.msra.mxu0 %v61
  %452 = vmatpush.msra.mxu0 %v57
  %453 = vmatpush.msra.mxu0 %v53
  %454 = vmatpush.msra.mxu0 %v49
  %455 = vmatpush.msra.mxu0 %v45
  %456 = vmatpush.msra.mxu0 %v41
  %457 = vmatpush.msra.mxu0 %v37
  %458 = vmatpush.msra.mxu0 %v33
  %459 = vmatpush.msra.mxu0 %v29
  %460 = vmatmul.f32.gmra.mxu0 %v416
  %v461 = vpop.f32.mrf.mxu0
  %v462 = vadd.f32 0.0, %v461
  %463 = vdwg.mxu0
  %464 = vmatpush.msra.mxu0 %v90
  %465 = vmatpush.msra.mxu0 %v86
  %466 = vmatpush.msra.mxu0 %v82
  %467 = vmatpush.msra.mxu0 %v78
  %468 = vmatpush.msra.mxu0 %v74
  %469 = vmatpush.msra.mxu0 %v70
  %470 = vmatpush.msra.mxu0 %v66
  %471 = vmatpush.msra.mxu0 %v62
  %472 = vmatpush.msra.mxu0 %v58
  %473 = vmatpush.msra.mxu0 %v54
  %474 = vmatpush.msra.mxu0 %v50
  %475 = vmatpush.msra.mxu0 %v46
  %476 = vmatpush.msra.mxu0 %v42
  %477 = vmatpush.msra.mxu0 %v38
  %478 = vmatpush.msra.mxu0 %v34
  %479 = vmatpush.msra.mxu0 %v30
  %480 = vmatmul.f32.gmra.mxu0 %v416
  %v481 = vpop.f32.mrf.mxu0
  %v482 = vadd.f32 0.0, %v481
  %483 = vdwg.mxu0
  %484 = vmatpush.msra.mxu0 %v91
  %485 = vmatpush.msra.mxu0 %v87
  %486 = vmatpush.msra.mxu0 %v83
  %487 = vmatpush.msra.mxu0 %v79
  %488 = vmatpush.msra.mxu0 %v75
  %489 = vmatpush.msra.mxu0 %v71
  %490 = vmatpush.msra.mxu0 %v67
  %491 = vmatpush.msra.mxu0 %v63
  %492 = vmatpush.msra.mxu0 %v59
  %493 = vmatpush.msra.mxu0 %v55
  %494 = vmatpush.msra.mxu0 %v51
  %495 = vmatpush.msra.mxu0 %v47
  %496 = vmatpush.msra.mxu0 %v43
  %497 = vmatpush.msra.mxu0 %v39
  %498 = vmatpush.msra.mxu0 %v35
  %499 = vmatpush.msra.mxu0 %v31
  %500 = vmatmul.f32.gmra.mxu0 %v416
  %v501 = vpop.f32.mrf.mxu0
  %v502 = vadd.f32 0.0, %v501
  %503 = vdwg.mxu0
  %v504 = vadd.f32 %v420, %v442
  %v505 = vadd.f32 %v421, %v462
  %v506 = vadd.f32 %v422, %v482
  %v507 = vadd.f32 %v423, %v502
  %v508 = vmul.f32 %v504, 0.5
  %v509 = vtanh.pop %v508
  %v510 = vmul.f32 %v509, 0.5
  %v511 = vadd.f32 %v510, 0.5
  %v512 = vmul.f32 %v505, 0.5
  %v513 = vtanh.pop %v512
  %v514 = vmul.f32 %v513, 0.5
  %v515 = vadd.f32 %v514, 0.5
  %v516 = vtanh.pop %v506
  %v517 = vmul.f32 %v507, 0.5
  %v518 = vtanh.pop %v517
  %v519 = vmul.f32 %v518, 0.5
  %v520 = vadd.f32 %v519, 0.5
  %v521 = vmul.f32 %v515, %v414
  %v522 = vmul.f32 %v511, %v516
  %v523 = vadd.f32 %v521, %v522
  %v524 = vtanh.pop %v523
  %v525 = vmul.f32 %v520, %v524
  %s526 = scalar_lea.vmem %s4, 24
  %527 = vst [vmem:[%s526] sm:$0xff] %v525
  %s528 = scalar_lea.vmem %s0, 128
  %v529 = vld [vmem:[%s528] sm:$0xff]
  %v530 = vld [vmem:[%s528 + $0x8] sm:$0xff]
  %v531 = vld [vmem:[%s528 + $0x10] sm:$0xff]
  %v532 = vld [vmem:[%s528 + $0x18] sm:$0xff]
  %533 = vmatpush.msra.mxu0 %v88
  %534 = vmatpush.msra.mxu0 %v84
  %535 = vmatpush.msra.mxu0 %v80
  %536 = vmatpush.msra.mxu0 %v76
  %537 = vmatpush.msra.mxu0 %v72
  %538 = vmatpush.msra.mxu0 %v68
  %539 = vmatpush.msra.mxu0 %v64
  %540 = vmatpush.msra.mxu0 %v60
  %541 = vmatpush.msra.mxu0 %v56
  %542 = vmatpush.msra.mxu0 %v52
  %543 = vmatpush.msra.mxu0 %v48
  %544 = vmatpush.msra.mxu0 %v44
  %545 = vmatpush.msra.mxu0 %v40
  %546 = vmatpush.msra.mxu0 %v36
  %547 = vmatpush.msra.mxu0 %v32
  %548 = vmatpush.msra.mxu0 %v28
  %549 = vmatmul.f32.gmra.mxu0 %v525
  %v550 = vpop.f32.mrf.mxu0
  %v551 = vadd.f32 0.0, %v550
  %552 = vdwg.mxu0
  %553 = vmatpush.msra.mxu0 %v89
  %554 = vmatpush.msra.mxu0 %v85
  %555 = vmatpush.msra.mxu0 %v81
  %556 = vmatpush.msra.mxu0 %v77
  %557 = vmatpush.msra.mxu0 %v73
  %558 = vmatpush.msra.mxu0 %v69
  %559 = vmatpush.msra.mxu0 %v65
  %560 = vmatpush.msra.mxu0 %v61
  %561 = vmatpush.msra.mxu0 %v57
  %562 = vmatpush.msra.mxu0 %v53
  %563 = vmatpush.msra.mxu0 %v49
  %564 = vmatpush.msra.mxu0 %v45
  %565 = vmatpush.msra.mxu0 %v41
  %566 = vmatpush.msra.mxu0 %v37
  %567 = vmatpush.msra.mxu0 %v33
  %568 = vmatpush.msra.mxu0 %v29
  %569 = vmatmul.f32.gmra.mxu0 %v525
  %v570 = vpop.f32.mrf.mxu0
  %v571 = vadd.f32 0.0, %v570
  %572 = vdwg.mxu0
  %573 = vmatpush.msra.mxu0 %v90
  %574 = vmatpush.msra.mxu0 %v86
  %575 = vmatpush.msra.mxu0 %v82
  %576 = vmatpush.msra.mxu0 %v78
  %577 = vmatpush.msra.mxu0 %v74
  %578 = vmatpush.msra.mxu0 %v70
  %579 = vmatpush.msra.mxu0 %v66
  %580 = vmatpush.msra.mxu0 %v62
  %581 = vmatpush.msra.mxu0 %v58
  %582 = vmatpush.msra.mxu0 %v54
  %583 = vmatpush.msra.mxu0 %v50
  %584 = vmatpush.msra.mxu0 %v46
  %585 = vmatpush.msra.mxu0 %v42
  %586 = vmatpush.msra.mxu0 %v38
  %587 = vmatpush.msra.mxu0 %v34
  %588 = vmatpush.msra.mxu0 %v30
  %589 = vmatmul.f32.gmra.mxu0 %v525
  %v590 = vpop.f32.mrf.mxu0
  %v591 = vadd.f32 0.0, %v590
  %592 = vdwg.mxu0
  %593 = vmatpush.msra.mxu0 %v91
  %594 = vmatpush.msra.mxu0 %v87
  %595 = vmatpush.msra.mxu0 %v83
  %596 = vmatpush.msra.mxu0 %v79
  %597 = vmatpush.msra.mxu0 %v75
  %598 = vmatpush.msra.mxu0 %v71
  %599 = vmatpush.msra.mxu0 %v67
  %600 = vmatpush.msra.mxu0 %v63
  %601 = vmatpush.msra.mxu0 %v59
  %602 = vmatpush.msra.mxu0 %v55
  %603 = vmatpush.msra.mxu0 %v51
  %604 = vmatpush.msra.mxu0 %v47
  %605 = vmatpush.msra.mxu0 %v43
  %606 = vmatpush.msra.mxu0 %v39
  %607 = vmatpush.msra.mxu0 %v35
  %608 = vmatpush.msra.mxu0 %v31
  %609 = vmatmul.f32.gmra.mxu0 %v525
  %v610 = vpop.f32.mrf.mxu0
  %v611 = vadd.f32 0.0, %v610
  %612 = vdwg.mxu0
  %v613 = vadd.f32 %v529, %v551
  %v614 = vadd.f32 %v530, %v571
  %v615 = vadd.f32 %v531, %v591
  %v616 = vadd.f32 %v532, %v611
  %v617 = vmul.f32 %v613, 0.5
  %v618 = vtanh.pop %v617
  %v619 = vmul.f32 %v618, 0.5
  %v620 = vadd.f32 %v619, 0.5
  %v621 = vmul.f32 %v614, 0.5
  %v622 = vtanh.pop %v621
  %v623 = vmul.f32 %v622, 0.5
  %v624 = vadd.f32 %v623, 0.5
  %v625 = vtanh.pop %v615
  %v626 = vmul.f32 %v616, 0.5
  %v627 = vtanh.pop %v626
  %v628 = vmul.f32 %v627, 0.5
  %v629 = vadd.f32 %v628, 0.5
  %v630 = vmul.f32 %v624, %v523
  %v631 = vmul.f32 %v620, %v625
  %v632 = vadd.f32 %v630, %v631
  %v633 = vtanh.pop %v632
  %v634 = vmul.f32 %v629, %v633
  %s635 = scalar_lea.vmem %s4, 32
  %636 = vst [vmem:[%s635] sm:$0xff] %v634
  %s637 = scalar_lea.vmem %s0, 160
  %v638 = vld [vmem:[%s637] sm:$0xff]
  %v639 = vld [vmem:[%s637 + $0x8] sm:$0xff]
  %v640 = vld [vmem:[%s637 + $0x10] sm:$0xff]
  %v641 = vld [vmem:[%s637 + $0x18] sm:$0xff]
  %642 = vmatpush.msra.mxu0 %v88
  %643 = vmatpush.msra.mxu0 %v84
  %644 = vmatpush.msra.mxu0 %v80
  %645 = vmatpush.msra.mxu0 %v76
  %646 = vmatpush.msra.mxu0 %v72
  %647 = vmatpush.msra.mxu0 %v68
  %648 = vmatpush.msra.mxu0 %v64
  %649 = vmatpush.msra.mxu0 %v60
  %650 = vmatpush.msra.mxu0 %v56
  %651 = vmatpush.msra.mxu0 %v52
  %652 = vmatpush.msra.mxu0 %v48
  %653 = vmatpush.msra.mxu0 %v44
  %654 = vmatpush.msra.mxu0 %v40
  %655 = vmatpush.msra.mxu0 %v36
  %656 = vmatpush.msra.mxu0 %v32
  %657 = vmatpush.msra.mxu0 %v28
  %658 = vmatmul.f32.gmra.mxu0 %v634
  %v659 = vpop.f32.mrf.mxu0
  %v660 = vadd.f32 0.0, %v659
  %661 = vdwg.mxu0
  %662 = vmatpush.msra.mxu0 %v89
  %663 = vmatpush.msra.mxu0 %v85
  %664 = vmatpush.msra.mxu0 %v81
  %665 = vmatpush.msra.mxu0 %v77
  %666 = vmatpush.msra.mxu0 %v73
  %667 = vmatpush.msra.mxu0 %v69
  %668 = vmatpush.msra.mxu0 %v65
  %669 = vmatpush.msra.mxu0 %v61
  %670 = vmatpush.msra.mxu0 %v57
  %671 = vmatpush.msra.mxu0 %v53
  %672 = vmatpush.msra.mxu0 %v49
  %673 = vmatpush.msra.mxu0 %v45
  %674 = vmatpush.msra.mxu0 %v41
  %675 = vmatpush.msra.mxu0 %v37
  %676 = vmatpush.msra.mxu0 %v33
  %677 = vmatpush.msra.mxu0 %v29
  %678 = vmatmul.f32.gmra.mxu0 %v634
  %v679 = vpop.f32.mrf.mxu0
  %v680 = vadd.f32 0.0, %v679
  %681 = vdwg.mxu0
  %682 = vmatpush.msra.mxu0 %v90
  %683 = vmatpush.msra.mxu0 %v86
  %684 = vmatpush.msra.mxu0 %v82
  %685 = vmatpush.msra.mxu0 %v78
  %686 = vmatpush.msra.mxu0 %v74
  %687 = vmatpush.msra.mxu0 %v70
  %688 = vmatpush.msra.mxu0 %v66
  %689 = vmatpush.msra.mxu0 %v62
  %690 = vmatpush.msra.mxu0 %v58
  %691 = vmatpush.msra.mxu0 %v54
  %692 = vmatpush.msra.mxu0 %v50
  %693 = vmatpush.msra.mxu0 %v46
  %694 = vmatpush.msra.mxu0 %v42
  %695 = vmatpush.msra.mxu0 %v38
  %696 = vmatpush.msra.mxu0 %v34
  %697 = vmatpush.msra.mxu0 %v30
  %698 = vmatmul.f32.gmra.mxu0 %v634
  %v699 = vpop.f32.mrf.mxu0
  %v700 = vadd.f32 0.0, %v699
  %701 = vdwg.mxu0
  %702 = vmatpush.msra.mxu0 %v91
  %703 = vmatpush.msra.mxu0 %v87
  %704 = vmatpush.msra.mxu0 %v83
  %705 = vmatpush.msra.mxu0 %v79
  %706 = vmatpush.msra.mxu0 %v75
  %707 = vmatpush.msra.mxu0 %v71
  %708 = vmatpush.msra.mxu0 %v67
  %709 = vmatpush.msra.mxu0 %v63
  %710 = vmatpush.msra.mxu0 %v59
  %711 = vmatpush.msra.mxu0 %v55
  %712 = vmatpush.msra.mxu0 %v51
  %713 = vmatpush.msra.mxu0 %v47
  %714 = vmatpush.msra.mxu0 %v43
  %715 = vmatpush.msra.mxu0 %v39
  %716 = vmatpush.msra.mxu0 %v35
  %717 = vmatpush.msra.mxu0 %v31
  %718 = vmatmul.f32.gmra.mxu0 %v634
  %v719 = vpop.f32.mrf.mxu0
  %v720 = vadd.f32 0.0, %v719
  %721 = vdwg.mxu0
  %v722 = vadd.f32 %v638, %v660
  %v723 = vadd.f32 %v639, %v680
  %v724 = vadd.f32 %v640, %v700
  %v725 = vadd.f32 %v641, %v720
  %v726 = vmul.f32 %v722, 0.5
  %v727 = vtanh.pop %v726
  %v728 = vmul.f32 %v727, 0.5
  %v729 = vadd.f32 %v728, 0.5
  %v730 = vmul.f32 %v723, 0.5
  %v731 = vtanh.pop %v730
  %v732 = vmul.f32 %v731, 0.5
  %v733 = vadd.f32 %v732, 0.5
  %v734 = vtanh.pop %v724
  %v735 = vmul.f32 %v725, 0.5
  %v736 = vtanh.pop %v735
  %v737 = vmul.f32 %v736, 0.5
  %v738 = vadd.f32 %v737, 0.5
  %v739 = vmul.f32 %v733, %v632
  %v740 = vmul.f32 %v729, %v734
  %v741 = vadd.f32 %v739, %v740
  %v742 = vtanh.pop %v741
  %v743 = vmul.f32 %v738, %v742
  %s744 = scalar_lea.vmem %s4, 40
  %745 = vst [vmem:[%s744] sm:$0xff] %v743
  %s746 = scalar_lea.vmem %s0, 192
  %v747 = vld [vmem:[%s746] sm:$0xff]
  %v748 = vld [vmem:[%s746 + $0x8] sm:$0xff]
  %v749 = vld [vmem:[%s746 + $0x10] sm:$0xff]
  %v750 = vld [vmem:[%s746 + $0x18] sm:$0xff]
  %751 = vmatpush.msra.mxu0 %v88
  %752 = vmatpush.msra.mxu0 %v84
  %753 = vmatpush.msra.mxu0 %v80
  %754 = vmatpush.msra.mxu0 %v76
  %755 = vmatpush.msra.mxu0 %v72
  %756 = vmatpush.msra.mxu0 %v68
  %757 = vmatpush.msra.mxu0 %v64
  %758 = vmatpush.msra.mxu0 %v60
  %759 = vmatpush.msra.mxu0 %v56
  %760 = vmatpush.msra.mxu0 %v52
  %761 = vmatpush.msra.mxu0 %v48
  %762 = vmatpush.msra.mxu0 %v44
  %763 = vmatpush.msra.mxu0 %v40
  %764 = vmatpush.msra.mxu0 %v36
  %765 = vmatpush.msra.mxu0 %v32
  %766 = vmatpush.msra.mxu0 %v28
  %767 = vmatmul.f32.gmra.mxu0 %v743
  %v768 = vpop.f32.mrf.mxu0
  %v769 = vadd.f32 0.0, %v768
  %770 = vdwg.mxu0
  %771 = vmatpush.msra.mxu0 %v89
  %772 = vmatpush.msra.mxu0 %v85
  %773 = vmatpush.msra.mxu0 %v81
  %774 = vmatpush.msra.mxu0 %v77
  %775 = vmatpush.msra.mxu0 %v73
  %776 = vmatpush.msra.mxu0 %v69
  %777 = vmatpush.msra.mxu0 %v65
  %778 = vmatpush.msra.mxu0 %v61
  %779 = vmatpush.msra.mxu0 %v57
  %780 = vmatpush.msra.mxu0 %v53
  %781 = vmatpush.msra.mxu0 %v49
  %782 = vmatpush.msra.mxu0 %v45
  %783 = vmatpush.msra.mxu0 %v41
  %784 = vmatpush.msra.mxu0 %v37
  %785 = vmatpush.msra.mxu0 %v33
  %786 = vmatpush.msra.mxu0 %v29
  %787 = vmatmul.f32.gmra.mxu0 %v743
  %v788 = vpop.f32.mrf.mxu0
  %v789 = vadd.f32 0.0, %v788
  %790 = vdwg.mxu0
  %791 = vmatpush.msra.mxu0 %v90
  %792 = vmatpush.msra.mxu0 %v86
  %793 = vmatpush.msra.mxu0 %v82
  %794 = vmatpush.msra.mxu0 %v78
  %795 = vmatpush.msra.mxu0 %v74
  %796 = vmatpush.msra.mxu0 %v70
  %797 = vmatpush.msra.mxu0 %v66
  %798 = vmatpush.msra.mxu0 %v62
  %799 = vmatpush.msra.mxu0 %v58
  %800 = vmatpush.msra.mxu0 %v54
  %801 = vmatpush.msra.mxu0 %v50
  %802 = vmatpush.msra.mxu0 %v46
  %803 = vmatpush.msra.mxu0 %v42
  %804 = vmatpush.msra.mxu0 %v38
  %805 = vmatpush.msra.mxu0 %v34
  %806 = vmatpush.msra.mxu0 %v30
  %807 = vmatmul.f32.gmra.mxu0 %v743
  %v808 = vpop.f32.mrf.mxu0
  %v809 = vadd.f32 0.0, %v808
  %810 = vdwg.mxu0
  %811 = vmatpush.msra.mxu0 %v91
  %812 = vmatpush.msra.mxu0 %v87
  %813 = vmatpush.msra.mxu0 %v83
  %814 = vmatpush.msra.mxu0 %v79
  %815 = vmatpush.msra.mxu0 %v75
  %816 = vmatpush.msra.mxu0 %v71
  %817 = vmatpush.msra.mxu0 %v67
  %818 = vmatpush.msra.mxu0 %v63
  %819 = vmatpush.msra.mxu0 %v59
  %820 = vmatpush.msra.mxu0 %v55
  %821 = vmatpush.msra.mxu0 %v51
  %822 = vmatpush.msra.mxu0 %v47
  %823 = vmatpush.msra.mxu0 %v43
  %824 = vmatpush.msra.mxu0 %v39
  %825 = vmatpush.msra.mxu0 %v35
  %826 = vmatpush.msra.mxu0 %v31
  %827 = vmatmul.f32.gmra.mxu0 %v743
  %v828 = vpop.f32.mrf.mxu0
  %v829 = vadd.f32 0.0, %v828
  %830 = vdwg.mxu0
  %v831 = vadd.f32 %v747, %v769
  %v832 = vadd.f32 %v748, %v789
  %v833 = vadd.f32 %v749, %v809
  %v834 = vadd.f32 %v750, %v829
  %v835 = vmul.f32 %v831, 0.5
  %v836 = vtanh.pop %v835
  %v837 = vmul.f32 %v836, 0.5
  %v838 = vadd.f32 %v837, 0.5
  %v839 = vmul.f32 %v832, 0.5
  %v840 = vtanh.pop %v839
  %v841 = vmul.f32 %v840, 0.5
  %v842 = vadd.f32 %v841, 0.5
  %v843 = vtanh.pop %v833
  %v844 = vmul.f32 %v834, 0.5
  %v845 = vtanh.pop %v844
  %v846 = vmul.f32 %v845, 0.5
  %v847 = vadd.f32 %v846, 0.5
  %v848 = vmul.f32 %v842, %v741
  %v849 = vmul.f32 %v838, %v843
  %v850 = vadd.f32 %v848, %v849
  %v851 = vtanh.pop %v850
  %v852 = vmul.f32 %v847, %v851
  %s853 = scalar_lea.vmem %s4, 48
  %854 = vst [vmem:[%s853] sm:$0xff] %v852
  %s855 = scalar_lea.vmem %s0, 224
  %v856 = vld [vmem:[%s855] sm:$0xff]
  %v857 = vld [vmem:[%s855 + $0x8] sm:$0xff]
  %v858 = vld [vmem:[%s855 + $0x10] sm:$0xff]
  %v859 = vld [vmem:[%s855 + $0x18] sm:$0xff]
  %860 = vmatpush.msra.mxu0 %v88
  %861 = vmatpush.msra.mxu0 %v84
  %862 = vmatpush.msra.mxu0 %v80
  %863 = vmatpush.msra.mxu0 %v76
  %864 = vmatpush.msra.mxu0 %v72
  %865 = vmatpush.msra.mxu0 %v68
  %866 = vmatpush.msra.mxu0 %v64
  %867 = vmatpush.msra.mxu0 %v60
  %868 = vmatpush.msra.mxu0 %v56
  %869 = vmatpush.msra.mxu0 %v52
  %870 = vmatpush.msra.mxu0 %v48
  %871 = vmatpush.msra.mxu0 %v44
  %872 = vmatpush.msra.mxu0 %v40
  %873 = vmatpush.msra.mxu0 %v36
  %874 = vmatpush.msra.mxu0 %v32
  %875 = vmatpush.msra.mxu0 %v28
  %876 = vmatmul.f32.gmra.mxu0 %v852
  %v877 = vpop.f32.mrf.mxu0
  %v878 = vadd.f32 0.0, %v877
  %879 = vdwg.mxu0
  %880 = vmatpush.msra.mxu0 %v89
  %881 = vmatpush.msra.mxu0 %v85
  %882 = vmatpush.msra.mxu0 %v81
  %883 = vmatpush.msra.mxu0 %v77
  %884 = vmatpush.msra.mxu0 %v73
  %885 = vmatpush.msra.mxu0 %v69
  %886 = vmatpush.msra.mxu0 %v65
  %887 = vmatpush.msra.mxu0 %v61
  %888 = vmatpush.msra.mxu0 %v57
  %889 = vmatpush.msra.mxu0 %v53
  %890 = vmatpush.msra.mxu0 %v49
  %891 = vmatpush.msra.mxu0 %v45
  %892 = vmatpush.msra.mxu0 %v41
  %893 = vmatpush.msra.mxu0 %v37
  %894 = vmatpush.msra.mxu0 %v33
  %895 = vmatpush.msra.mxu0 %v29
  %896 = vmatmul.f32.gmra.mxu0 %v852
  %v897 = vpop.f32.mrf.mxu0
  %v898 = vadd.f32 0.0, %v897
  %899 = vdwg.mxu0
  %900 = vmatpush.msra.mxu0 %v90
  %901 = vmatpush.msra.mxu0 %v86
  %902 = vmatpush.msra.mxu0 %v82
  %903 = vmatpush.msra.mxu0 %v78
  %904 = vmatpush.msra.mxu0 %v74
  %905 = vmatpush.msra.mxu0 %v70
  %906 = vmatpush.msra.mxu0 %v66
  %907 = vmatpush.msra.mxu0 %v62
  %908 = vmatpush.msra.mxu0 %v58
  %909 = vmatpush.msra.mxu0 %v54
  %910 = vmatpush.msra.mxu0 %v50
  %911 = vmatpush.msra.mxu0 %v46
  %912 = vmatpush.msra.mxu0 %v42
  %913 = vmatpush.msra.mxu0 %v38
  %914 = vmatpush.msra.mxu0 %v34
  %915 = vmatpush.msra.mxu0 %v30
  %916 = vmatmul.f32.gmra.mxu0 %v852
  %v917 = vpop.f32.mrf.mxu0
  %v918 = vadd.f32 0.0, %v917
  %919 = vdwg.mxu0
  %920 = vmatpush.msra.mxu0 %v91
  %921 = vmatpush.msra.mxu0 %v87
  %922 = vmatpush.msra.mxu0 %v83
  %923 = vmatpush.msra.mxu0 %v79
  %924 = vmatpush.msra.mxu0 %v75
  %925 = vmatpush.msra.mxu0 %v71
  %926 = vmatpush.msra.mxu0 %v67
  %927 = vmatpush.msra.mxu0 %v63
  %928 = vmatpush.msra.mxu0 %v59
  %929 = vmatpush.msra.mxu0 %v55
  %930 = vmatpush.msra.mxu0 %v51
  %931 = vmatpush.msra.mxu0 %v47
  %932 = vmatpush.msra.mxu0 %v43
  %933 = vmatpush.msra.mxu0 %v39
  %934 = vmatpush.msra.mxu0 %v35
  %935 = vmatpush.msra.mxu0 %v31
  %936 = vmatmul.f32.gmra.mxu0 %v852
  %v937 = vpop.f32.mrf.mxu0
  %v938 = vadd.f32 0.0, %v937
  %939 = vdwg.mxu0
  %v940 = vadd.f32 %v856, %v878
  %v941 = vadd.f32 %v857, %v898
  %v942 = vadd.f32 %v858, %v918
  %v943 = vadd.f32 %v859, %v938
  %v944 = vmul.f32 %v940, 0.5
  %v945 = vtanh.pop %v944
  %v946 = vmul.f32 %v945, 0.5
  %v947 = vadd.f32 %v946, 0.5
  %v948 = vmul.f32 %v941, 0.5
  %v949 = vtanh.pop %v948
  %v950 = vmul.f32 %v949, 0.5
  %v951 = vadd.f32 %v950, 0.5
  %v952 = vtanh.pop %v942
  %v953 = vmul.f32 %v943, 0.5
  %v954 = vtanh.pop %v953
  %v955 = vmul.f32 %v954, 0.5
  %v956 = vadd.f32 %v955, 0.5
  %v957 = vmul.f32 %v951, %v850
  %v958 = vmul.f32 %v947, %v952
  %v959 = vadd.f32 %v957, %v958
  %v960 = vtanh.pop %v959
  %v961 = vmul.f32 %v956, %v960
  %s962 = scalar_lea.vmem %s4, 56
  %963 = vst [vmem:[%s962] sm:$0xff] %v961
  %964 = vst [vmem:[#allocation2] sm:$0xff] %v961
  %965 = vst [vmem:[#allocation3] sm:$0xff] %v959
  // Predicated region
  $region22: #{dlstm_forward_pallas.2} parent=0 // pred_check
    %p966 = pneg %p20
  $region23: #{dlstm_forward_pallas.2} parent=0 // pred_check_branch
    %968 = sbr.rel (%p966) target = $region25
  $region24: #{dlstm_forward_pallas.2} parent=0 // pred_region
    %969 = vst [vmem:[%s5] sm:$0xff] %v961
    %970 = vst [vmem:[%s6] sm:$0xff] %v959
  $region25: #{dlstm_forward_pallas.2} parent=0 // pred_fallthru
    _
  // Predicated region
  $region26: #{dlstm_forward_pallas.2} parent=0 // pred_check
    _
  $region27: #{dlstm_forward_pallas.2} parent=0 // pred_check_branch
    %972 = sbr.rel (0) target = $region29
  $region28: #{dlstm_forward_pallas.2} parent=0 // pred_region
    _
  $region29: #{dlstm_forward_pallas.2} parent=0 // pred_fallthru
    _
  // Predicated region
  $region30: #{dlstm_forward_pallas.2} parent=0 // pred_check
    _
  $region31: #{dlstm_forward_pallas.2} parent=0 // pred_check_branch
    %974 = sbr.rel (0) target = $region33
  $region32: #{dlstm_forward_pallas.2} parent=0 // pred_region
    _
  $region33: #{dlstm_forward_pallas.2} parent=0 // pred_fallthru
    _
  // Predicated region
  $region34: #{dlstm_forward_pallas.2} parent=0 // pred_check
    _
  $region35: #{dlstm_forward_pallas.2} parent=0 // pred_check_branch
    %976 = sbr.rel (0) target = $region37
  $region36: #{dlstm_forward_pallas.2} parent=0 // pred_region
    _
  $region37: #{dlstm_forward_pallas.2} parent=0 // pred_fallthru
    _
  // Predicated region
  $region38: #{dlstm_forward_pallas.2} parent=0 // pred_check
    _
  $region39: #{dlstm_forward_pallas.2} parent=0 // pred_check_branch
    %978 = sbr.rel (0) target = $region41
  $region40: #{dlstm_forward_pallas.2} parent=0 // pred_region
    _
  $region41: #{dlstm_forward_pallas.2} parent=0 // pred_fallthru
    _
  // Predicated region
  $region42: #{dlstm_forward_pallas.2} parent=0 // pred_check
    _
  $region43: #{dlstm_forward_pallas.2} parent=0 // pred_check_branch
    %980 = sbr.rel (0) target = $region45
  $region44: #{dlstm_forward_pallas.2} parent=0 // pred_region
    _
  $region45: #{dlstm_forward_pallas.2} parent=0 // pred_fallthru
    _
  // Predicated region
  $region46: #{dlstm_forward_pallas.2} parent=0 // pred_check
    _
  $region47: #{dlstm_forward_pallas.2} parent=0 // pred_check_branch
    %982 = sbr.rel (0) target = $region49
  $region48: #{dlstm_forward_pallas.2} parent=0 // pred_region
    _
  $region49: #{dlstm_forward_pallas.2} parent=0 // pred_fallthru
    _

</llo_original>
